<compile_context>
chip_gen: v7x
topology: tpu7x:2x2x1
jax: 0.10.0
libtpu: 0.0.40
codegen_flags: <defaults>
</compile_context>

<pallas_src>
import math

import jax
import jax.numpy as jnp
from jax.experimental import pallas as pl
from jax.experimental.pallas import tpu as pltpu


_TARGET_BLOCK_BYTES = 4 << 20    # ~4 MiB x/out blocks (mem-bound streaming add)
_VMEM_LIMIT_BYTES = 32 << 20     # explicit scoped VMEM; safe on v5e/v6e/v7x
_SMALL_INPUT_BYTES = 1 << 20     # below this, plain XLA add wins vs. dispatch
_SMALL_SPATIAL_FLATTEN_LIMIT = 65536  # max C*H*W for the flattened-row 4D path


# ---------------------------------------------------------------------------
# Kernel body: elementwise add with in-kernel broadcasting of the bias block.
# Works for bias blocks shaped (1, tw) (row bias) or (tr, 1) (column bias).
# dtype promotion (x native + bias promoted) happens here on the VPU.
# ---------------------------------------------------------------------------
def _add_kernel(x_ref, b_ref, o_ref):
    o_ref[...] = (x_ref[...] + b_ref[...]).astype(o_ref.dtype)


# ---------------------------------------------------------------------------
# Tiling helpers.
# ---------------------------------------------------------------------------
def _cdiv(a, b):
    return -(-a // b)


def _sublane_multiple(dtype):
    # f32 -> 8, bf16 -> 16, int8/fp8 -> 32 sublane packing.
    return max(8, 32 // jnp.dtype(dtype).itemsize)


def _choose_lane_tile(width):
    if width <= 4096:
        return width          # full-width block (equal to array dim -> legal)
    return 2048               # multiple of 128; Pallas masks the remainder block


def _choose_row_tile(rows, row_bytes, sub, min_blocks=1):
    """Pick a sublane-aligned row tile near _TARGET_BLOCK_BYTES.

    min_blocks=2 is requested when this is the only multi-block grid axis, so
    v7x's two TensorCores both get work under "parallel" semantics.
    """
    tr = _TARGET_BLOCK_BYTES // max(1, row_bytes)
    tr = max(sub, (tr // sub) * sub)
    if tr > rows:
        tr = rows
    if min_blocks > 1 and _cdiv(rows, tr) < min_blocks and rows >= min_blocks * sub:
        tr = _cdiv(_cdiv(rows, min_blocks), sub) * sub
    return tr


def _tile_params(x2d, out_dtype, width):
    itemsize = max(jnp.dtype(x2d.dtype).itemsize, jnp.dtype(out_dtype).itemsize)
    sub = max(_sublane_multiple(x2d.dtype), _sublane_multiple(out_dtype))
    tw = _choose_lane_tile(width)
    gj = _cdiv(width, tw)
    tr = _choose_row_tile(x2d.shape[0], tw * itemsize, sub,
                          min_blocks=2 if gj < 2 else 1)
    return tr, tw, gj


# ---------------------------------------------------------------------------
# (rows, C) + (1, C) row-broadcast bias (lane-tiled, bias block resident).
# ---------------------------------------------------------------------------
def _row_bias_call(x2d, bias_row, out_dtype):
    R, C = x2d.shape
    tr, tw, gj = _tile_params(x2d, out_dtype, C)
    grid = (_cdiv(R, tr), gj)
    return pl.pallas_call(
        _add_kernel,
        out_shape=jax.ShapeDtypeStruct((R, C), out_dtype),
        grid=grid,
        in_specs=[
            pl.BlockSpec((tr, tw), lambda i, j: (i, j)),
            pl.BlockSpec((1, tw), lambda i, j: (0, j)),   # bias row stays resident
        ],
        out_specs=pl.BlockSpec((tr, tw), lambda i, j: (i, j)),
        compiler_params=pltpu.CompilerParams(
            dimension_semantics=("parallel", "parallel"),
            vmem_limit_bytes=_VMEM_LIMIT_BYTES),
    )(x2d, bias_row)


def _add_bias_row(x2d, bias_row, out_dtype):
    """x2d: (R, C), bias_row: (1, C). Lane-densifies non-128-multiple C when
    possible by folding k = 128 // gcd(C, 128) rows into the lane axis."""
    R, C = x2d.shape
    if C % 128 != 0:
        k = 128 // math.gcd(C, 128)
        if k > 1 and R > 0 and R % k == 0:
            # Pure row-major view: (R, C) -> (R//k, k*C); folded bias row is
            # the original bias row repeated k times. k*C is a multiple of 128.
            x_f = x2d.reshape(R // k, k * C)
            b_f = jnp.tile(bias_row, (1, k))
            y_f = _row_bias_call(x_f, b_f, out_dtype)
            return y_f.reshape(R, C)
    return _row_bias_call(x2d, bias_row, out_dtype)


# ---------------------------------------------------------------------------
# (rows, W) + (rows, 1) column-broadcast bias (4D NCHW path with rows = N*C,
# W = H*W, so no transposes are needed).
# ---------------------------------------------------------------------------
def _add_bias_col(x2d, bias_col, out_dtype):
    R, W = x2d.shape
    tr, tw, gj = _tile_params(x2d, out_dtype, W)
    grid = (_cdiv(R, tr), gj)
    return pl.pallas_call(
        _add_kernel,
        out_shape=jax.ShapeDtypeStruct((R, W), out_dtype),
        grid=grid,
        in_specs=[
            pl.BlockSpec((tr, tw), lambda i, j: (i, j)),
            pl.BlockSpec((tr, 1), lambda i, j: (i, 0)),
        ],
        out_specs=pl.BlockSpec((tr, tw), lambda i, j: (i, j)),
        compiler_params=pltpu.CompilerParams(
            dimension_semantics=("parallel", "parallel"),
            vmem_limit_bytes=_VMEM_LIMIT_BYTES),
    )(x2d, bias_col)


# ---------------------------------------------------------------------------
# Module wrapper
# ---------------------------------------------------------------------------
class AddBias:
    """JAX/Pallas port of the PyTorch AddBias module."""

    def __init__(self, bias):
        # Mirrors nn.Parameter(bias.unsqueeze(1)): stored as (C, 1).
        self._bias = jnp.asarray(bias).reshape(-1, 1)

    def __call__(self, x):
        x = jnp.asarray(x)
        bias = self._bias.reshape(-1)                       # (C,)
        C = bias.shape[0]
        out_dtype = jnp.result_type(x.dtype, bias.dtype)    # match x + bias promotion
        bias = bias.astype(out_dtype)                       # tiny; x stays native

        small = x.size * jnp.dtype(out_dtype).itemsize <= _SMALL_INPUT_BYTES

        if x.ndim == 2:
            if x.shape[1] != C:
                raise ValueError(f"channel mismatch: x has {x.shape[1]}, bias has {C}")
            if small:
                # Tiny inputs: fused XLA add beats kernel dispatch overhead.
                return (x + bias.reshape(1, C)).astype(out_dtype)
            return _add_bias_row(x, bias.reshape(1, C), out_dtype)

        elif x.ndim == 4:
            N, Cx, H, W = x.shape
            if Cx != C:
                raise ValueError(f"channel mismatch: x has {Cx}, bias has {C}")
            if small:
                return (x + bias.reshape(1, C, 1, 1)).astype(out_dtype)
            HW = H * W
            if HW % 128 == 0:
                # Lane-dense view (no data movement): NCHW -> (N*C, H*W), per-row bias.
                x_flat = x.reshape(N * C, HW)
                bias_col = jnp.tile(bias, (N,)).reshape(N * C, 1)
                y_flat = _add_bias_col(x_flat, bias_col, out_dtype)
            elif C * HW <= _SMALL_SPATIAL_FLATTEN_LIMIT:
                # Small / misaligned spatial dims: flatten channels into the
                # lane axis and use a resident repeated bias row -> lane-dense
                # stores instead of masked vst on every vreg.
                x_flat = x.reshape(N, C * HW)
                bias_row = jnp.repeat(bias, HW).reshape(1, C * HW)
                y_flat = _add_bias_row(x_flat, bias_row, out_dtype)
            else:
                # Large misaligned HW: masking fraction is small; avoid building
                # a huge repeated bias row.
                x_flat = x.reshape(N * C, HW)
                bias_col = jnp.tile(bias, (N,)).reshape(N * C, 1)
                y_flat = _add_bias_col(x_flat, bias_col, out_dtype)
            return y_flat.reshape(N, C, H, W)

        else:
            # Original module only supports the 2D / 4D broadcast patterns.
            raise ValueError(f"AddBias expects 2D or 4D input, got {x.ndim}D")


if __name__ == "__main__":
    key = jax.random.PRNGKey(0)
    keys = jax.random.split(key, 8)

    # ---- small 4D case (fast XLA path): NCHW input, per-channel bias ----
    C4 = 4
    bias4 = jax.random.normal(keys[0], (C4,), dtype=jnp.float32)
    x4 = jax.random.normal(keys[1], (2, C4, 16, 16), dtype=jnp.float32)
    out4 = jax.block_until_ready(AddBias(bias4)(x4))
    ref4 = x4 + bias4.reshape(1, C4, 1, 1)
    assert out4.shape == x4.shape and out4.dtype == x4.dtype
    assert jnp.allclose(out4, ref4, atol=1e-6, rtol=1e-6)

    # ---- small 2D case (fast XLA path) ----
    C2 = 32
    bias2 = jax.random.normal(keys[2], (C2,), dtype=jnp.float32)
    x2 = jax.random.normal(keys[3], (8, C2), dtype=jnp.float32)
    out2 = jax.block_until_ready(AddBias(bias2)(x2))
    assert jnp.allclose(out2, x2 + bias2.reshape(1, C2), atol=1e-6, rtol=1e-6)

    # ---- large 2D, lane-dense C (Pallas row path, >=2 row blocks) ----
    Cw = 768
    bw = jax.random.normal(keys[4], (Cw,), dtype=jnp.float32)
    xw = jax.random.normal(keys[5], (1024, Cw), dtype=jnp.float32)
    outw = jax.block_until_ready(AddBias(bw)(xw))
    assert jnp.allclose(outw, xw + bw.reshape(1, Cw), atol=1e-6, rtol=1e-6)

    # ---- large 2D, C not multiple of 128 (lane-folded Pallas row path) ----
    Cf = 96
    bf = jax.random.normal(keys[6], (Cf,), dtype=jnp.float32)
    xf = jax.random.normal(keys[7], (4096, Cf), dtype=jnp.float32)
    outf = jax.block_until_ready(AddBias(bf)(xf))
    assert jnp.allclose(outf, xf + bf.reshape(1, Cf), atol=1e-6, rtol=1e-6)

    # ---- large 4D, HW multiple of 128 (Pallas column path) ----
    kk = jax.random.split(keys[0], 4)
    Cc = 32
    bc = jax.random.normal(kk[0], (Cc,), dtype=jnp.float32)
    xc = jax.random.normal(kk[1], (4, Cc, 32, 128), dtype=jnp.float32)
    outc = jax.block_until_ready(AddBias(bc)(xc))
    assert jnp.allclose(outc, xc + bc.reshape(1, Cc, 1, 1), atol=1e-6, rtol=1e-6)

    # ---- large 4D, small misaligned spatial dims (flattened row path) ----
    Cs = 64
    bs = jax.random.normal(kk[2], (Cs,), dtype=jnp.float32)
    xs = jax.random.normal(kk[3], (128, Cs, 7, 7), dtype=jnp.float32)
    outs = jax.block_until_ready(AddBias(bs)(xs))
    assert jnp.allclose(outs, xs + bs.reshape(1, Cs, 1, 1), atol=1e-6, rtol=1e-6)

    # ---- mixed dtype: bf16 x + f32 bias promoted in-kernel (no wrapper cast) ----
    km = jax.random.split(keys[1], 2)
    Cm = 256
    bm = jax.random.normal(km[0], (Cm,), dtype=jnp.float32)
    xm = jax.random.normal(km[1], (4096, Cm), dtype=jnp.bfloat16)
    outm = jax.block_until_ready(AddBias(bm)(xm))
    assert outm.dtype == jnp.float32
    refm = xm.astype(jnp.float32) + bm.reshape(1, Cm)
    assert jnp.allclose(outm, refm, atol=1e-6, rtol=1e-6)

    print("KERNEL_OK")
</pallas_src>

<mosaic_0001>
module attributes {stable_mosaic.version = 11 : i64} {
  func.func @_add_kernel(%arg0: i32, %arg1: i32, %arg2: memref<512x768xf32, #tpu.memory_space<vmem>>, %arg3: memref<1x768xf32, #tpu.memory_space<vmem>>, %arg4: memref<512x768xf32, #tpu.memory_space<vmem>>) attributes {dimension_semantics = [#tpu.dimension_semantics<parallel>, #tpu.dimension_semantics<parallel>], iteration_bounds = array<i64: 2, 1>, scalar_prefetch = 0 : i64, scratch_operands = 0 : i64, tpu.core_type = #tpu.core_type<tc>, window_params = [{transform_indices = @transform_0, window_bounds = array<i64: 512, 768>}, {transform_indices = @transform_1, window_bounds = array<i64: 1, 768>}, {transform_indices = @transform_2, window_bounds = array<i64: 512, 768>}]} {
    %c0 = arith.constant 0 : index
    %c0_0 = arith.constant 0 : index
    %0 = vector.load %arg2[%c0, %c0_0] : memref<512x768xf32, #tpu.memory_space<vmem>>, vector<512x768xf32>
    %c0_1 = arith.constant 0 : index
    %c0_2 = arith.constant 0 : index
    %1 = vector.load %arg3[%c0_1, %c0_2] : memref<1x768xf32, #tpu.memory_space<vmem>>, vector<1x768xf32>
    %2 = vector.broadcast %1 : vector<1x768xf32> to vector<512x768xf32>
    %3 = arith.addf %0, %2 : vector<512x768xf32>
    %c0_3 = arith.constant 0 : index
    %c0_4 = arith.constant 0 : index
    %4 = vector.load %arg4[%c0_3, %c0_4] : memref<512x768xf32, #tpu.memory_space<vmem>>, vector<512x768xf32>
    tpu.vector_store %arg4[%c0_3, %c0_4], %3 {strides = array<i32>} : memref<512x768xf32, #tpu.memory_space<vmem>>, vector<512x768xf32>,
    return
  }
  func.func @transform_0(%arg0: i32, %arg1: i32) -> (i32, i32) {
    %c0_i32 = arith.constant 0 : i32
    return %arg0, %arg1 : i32, i32
  }
  func.func @transform_1(%arg0: i32, %arg1: i32) -> (i32, i32) {
    %c0_i32 = arith.constant 0 : i32
    %c0_i32_0 = arith.constant 0 : i32
    return %c0_i32, %arg1 : i32, i32
  }
  func.func @transform_2(%arg0: i32, %arg1: i32) -> (i32, i32) {
    %c0_i32 = arith.constant 0 : i32
    return %arg0, %arg1 : i32, i32
  }
}

</mosaic_0001>

<llo_original>
// kernel: tpu_custom_call.1
$region0: #{tpu_custom_call.1}
  #allocation0 [shape = 'u32[]', space=smem, size = 0x4, offset = 0x4, fixed_abs, tag = 'smem constant byte address 0x4 - core index']
  #allocation1 [shape = 'u32[144,128]{1,0:T(1,128)}', space=vmem, size = 0x12000, scoped, tag = 'internal scratch']
  %s0 = inlined_call_operand.hbm [shape: f32[1024,768], index: 0, kind: input, shape index: {}]
  %s1 = inlined_call_operand.hbm [shape: f32[1,768], index: 1, kind: input, shape index: {}]
  %s2 = inlined_call_operand.hbm [shape: f32[1024,768], index: 2, kind: output, shape index: {}]
  %s3 = sld [smem:[#allocation0]]
  $region49: #{tpu_custom_call.1} parent=0
    _
  %s5 = ssub.s32 1, %s3
  %s6 = scalar_select 0, %s5, %s3
  $region1: #{tpu_custom_call.1} parent=0
    #allocation2 [shape = 'u8[3145728]{0}', space=vmem, size = 0x300000, scoped, tag = 'input window, operand 0']
    #allocation3 [shape = 's32[2]{0}', space=sflag, size = 0x8, scoped, tag = 'scoped memory for tpu_custom_call.1']
    #allocation4 [shape = 's32[2]{0}', space=sflag, size = 0x8, scoped, tag = 'scoped memory for tpu_custom_call.1']
    #allocation5 [shape = 'u8[3072]{0}', space=vmem, size = 0xc00, scoped, tag = 'input window, operand 1, single buffered']
    #allocation6 [shape = 's32[1]{0}', space=sflag, size = 0x4, scoped, tag = 'scoped memory for tpu_custom_call.1']
    #allocation7 [shape = 'u8[3145728]{0}', space=vmem, size = 0x300000, scoped, tag = 'output window, operand 0']
    %7 = vsyncpa [#allocation3], 0
    %s8 = scalar_lea.sflag [#allocation3], 1
    %9 = vsyncpa %s8, 0
    %10 = vsyncpa [#allocation6], 0
    %11 = vsyncpa [#allocation4], 0
    %s12 = scalar_lea.sflag [#allocation4], 1
    %13 = vsyncpa %s12, 0
    loop: start=0, step=1, limit=4
    $region2: #{tpu_custom_call.1} parent=1 // loop_pre_header
      _
    $region3: #{tpu_custom_call.1} parent=1 // loop_header
      %s15 = sphi 0, %s19
      %p16 = scmp.ge.s32.totalorder %s15, 4
      %s22 = sphi 0, %s34
      %s23 = sphi 0, %s30
      %s24 = sphi 0, %s22
      %s25 = sphi 0, %s23
      %s26 = sphi 0, %s24
      %s27 = sphi 0, %s25
      %s39 = sphi 0, %s41
      %s42 = sphi 0, %s39
      %s43 = sphi 0, %s42
      %s59 = sphi 0, %s43
      %s65 = sphi 0, %s67
      %s68 = sphi 0, %s65
      %s69 = sphi 0, %s68
      %s85 = sphi 0, %s69
      %s93 = sphi 0, %s95
      %s96 = sphi 0, %s93
      %s97 = sphi 0, %s96
      %s113 = sphi 0, %s97
    $region4: #{tpu_custom_call.1} parent=1 // loop_header_branch
      %18 = sbr.rel (%p16) target = $region8
    $region5: #{tpu_custom_call.1} parent=1 // loop_body
      %s20 = ssub.s32 %s15, 1
      %s21 = ssub.s32 %s15, 2
      %s28 = sadd.s32 1, %s23
      %p29 = scmp.ge.s32.totalorder %s28, 1
      %s30 = scalar_select %p29, 0, %s28
      %s31 = sadd.s32 1, %s22
      %s32 = scalar_select %p29, %s31, %s22
      %p33 = scmp.ge.s32.totalorder %s32, 2
      %s34 = scalar_select %p33, 0, %s32
      %s35 = ssub.s32 %s22, %s34
      %s36 = ssub.s32 %s23, %s30
      %s37 = sor.u32 %s35, %s36
      %p38 = scmp.eq.s32.totalorder %s37, 0
      %s40 = sadd.s32 %s39, 1
      %s41 = scalar_select %p38, %s39, %s40
      %p44 = pneg %p38
      %p45 = scmp.eq.s32.totalorder %s15, 1
      %p46 = por %p44, %p45
      %p47 = scmp.ne.s32.totalorder %s39, %s42
      %p48 = scmp.eq.s32.totalorder %s15, 0
      %p49 = por %p47, %p48
      %p50 = scmp.ne.s32.totalorder %s39, %s42
      %p51 = scmp.eq.s32.totalorder %s20, 1
      %p52 = por %p50, %p51
      %p53 = scmp.ne.s32.totalorder %s42, %s43
      %p54 = scmp.eq.s32.totalorder %s20, 0
      %p55 = por %p53, %p54
      %p56 = scmp.ne.s32.totalorder %s42, %s43
      %p57 = scmp.eq.s32.totalorder %s21, 1
      %p58 = por %p56, %p57
      %p60 = scmp.ne.s32.totalorder %s43, %s59
      %p61 = scmp.eq.s32.totalorder %s21, 0
      %p62 = por %p60, %p61
      %s63 = ssub.s32 %s23, %s30
      %p64 = scmp.eq.s32.totalorder %s63, 0
      %s66 = sadd.s32 %s65, 1
      %s67 = scalar_select %p64, %s65, %s66
      %p70 = pneg %p64
      %p71 = scmp.eq.s32.totalorder %s15, 1
      %p72 = por %p70, %p71
      %p73 = scmp.ne.s32.totalorder %s65, %s68
      %p74 = scmp.eq.s32.totalorder %s15, 0
      %p75 = por %p73, %p74
      %p76 = scmp.ne.s32.totalorder %s65, %s68
      %p77 = scmp.eq.s32.totalorder %s20, 1
      %p78 = por %p76, %p77
      %p79 = scmp.ne.s32.totalorder %s68, %s69
      %p80 = scmp.eq.s32.totalorder %s20, 0
      %p81 = por %p79, %p80
      %p82 = scmp.ne.s32.totalorder %s68, %s69
      %p83 = scmp.eq.s32.totalorder %s21, 1
      %p84 = por %p82, %p83
      %p86 = scmp.ne.s32.totalorder %s69, %s85
      %p87 = scmp.eq.s32.totalorder %s21, 0
      %p88 = por %p86, %p87
      %s89 = ssub.s32 %s22, %s34
      %s90 = ssub.s32 %s23, %s30
      %s91 = sor.u32 %s89, %s90
      %p92 = scmp.eq.s32.totalorder %s91, 0
      %s94 = sadd.s32 %s93, 1
      %s95 = scalar_select %p92, %s93, %s94
      %p98 = pneg %p92
      %p99 = scmp.eq.s32.totalorder %s15, 1
      %p100 = por %p98, %p99
      %p101 = scmp.ne.s32.totalorder %s93, %s96
      %p102 = scmp.eq.s32.totalorder %s15, 0
      %p103 = por %p101, %p102
      %p104 = scmp.ne.s32.totalorder %s93, %s96
      %p105 = scmp.eq.s32.totalorder %s20, 1
      %p106 = por %p104, %p105
      %p107 = scmp.ne.s32.totalorder %s96, %s97
      %p108 = scmp.eq.s32.totalorder %s20, 0
      %p109 = por %p107, %p108
      %p110 = scmp.ne.s32.totalorder %s96, %s97
      %p111 = scmp.eq.s32.totalorder %s21, 1
      %p112 = por %p110, %p111
      %p114 = scmp.ne.s32.totalorder %s97, %s113
      %p115 = scmp.eq.s32.totalorder %s21, 0
      %p116 = por %p114, %p115
      %p117 = scmp.le.s32.totalorder 1, %s15
      %p118 = scmp.lt.s32.totalorder %s15, 3
      %p119 = pnand %p117, %p118
      %p120 = pneg %p119
      // Predicated region
      $region9: #{tpu_custom_call.1} parent=5 // pred_check
        _
      $region10: #{tpu_custom_call.1} parent=5 // pred_check_branch
        %122 = sbr.rel (%p119) target = $region12
      $region11: #{tpu_custom_call.1} parent=5 // pred_region
        %s123 = ssub.s32 %s15, 1
        // Predicated region
        $region13: #{tpu_custom_call.1} parent=11 // pred_check
          %p124 = pneg %p81
        $region14: #{tpu_custom_call.1} parent=11 // pred_check_branch
          %126 = sbr.rel (%p124) target = $region16
        $region15: #{tpu_custom_call.1} parent=11 // pred_region
          %s127 = smul.u32 6, %s25
          %s129 = ssub.s32 96, 96
          %130 = vsyncadd [#allocation6], %s129
          %s131 = smul.addr %s127, 16
          %s132 = scalar_lea.hbm %s1, %s131
          %s134 = sshll.u32 [#allocation5], 4
          %s135 = int_to_ptr.vmem [resolvable:$true] %s134
          %137 = dma.hbm_to_vmem [thread:$0]  %s132, 96, %s135, [#allocation6]
        $region16: #{tpu_custom_call.1} parent=11 // pred_fallthru
          _
      $region12: #{tpu_custom_call.1} parent=5 // pred_fallthru
        _
      %p138 = scmp.lt.s32.totalorder %s15, 2
      // Predicated region
      $region17: #{tpu_custom_call.1} parent=5 // pred_check
        %p139 = pneg %p138
      $region18: #{tpu_custom_call.1} parent=5 // pred_check_branch
        %141 = sbr.rel (%p139) target = $region20
      $region19: #{tpu_custom_call.1} parent=5 // pred_region
        // Predicated region
        $region21: #{tpu_custom_call.1} parent=19 // pred_check
          %p142 = pneg %p49
        $region22: #{tpu_custom_call.1} parent=19 // pred_check_branch
          %144 = sbr.rel (%p142) target = $region24
        $region23: #{tpu_custom_call.1} parent=19 // pred_region
          %s145 = sand.u32 %s39, 1
          %s146 = scalar_lea.sflag [#allocation3], %s145
          %s147 = sand.u32 %s39, 1
          %s148 = smul.addr %s147, 3072
          %s149 = scalar_lea.vmem [#allocation2], %s148
          %s150 = smul.u32 64, %s22
          %s151 = smul.u32 6, %s23
          %s153 = ssub.s32 49152, 49152
          %154 = vsyncadd %s146, %s153
          %s155 = smul.addr %s150, 6
          %s156 = sadd.s32 %s151, %s155
          %s157 = smul.addr %s156, 128
          %s158 = scalar_lea.hbm %s0, %s157
          %s159 = sshll.u32 %s149, 4
          %s160 = int_to_ptr.vmem [resolvable:$true] %s159
          %165 = dma.hbm_to_vmem [thread:$0]  %s158, 49152, %s160, %s146, 768, 768, 48
        $region24: #{tpu_custom_call.1} parent=19 // pred_fallthru
          _
      $region20: #{tpu_custom_call.1} parent=5 // pred_fallthru
        _
      %p166 = scmp.le.s32.totalorder 1, %s15
      %p167 = scmp.lt.s32.totalorder %s15, 3
      %p168 = pnand %p166, %p167
      %p169 = pneg %p168
      // Predicated region
      $region25: #{tpu_custom_call.1} parent=5 // pred_check
        _
      $region26: #{tpu_custom_call.1} parent=5 // pred_check_branch
        %171 = sbr.rel (%p168) target = $region28
      $region27: #{tpu_custom_call.1} parent=5 // pred_region
        %s172 = ssub.s32 %s15, 1
        %s173 = sand.u32 %s42, 1
        %s174 = scalar_lea.sflag [#allocation3], %s173
        %s175 = sand.u32 %s42, 1
        %s176 = smul.addr %s175, 3072
        %s177 = scalar_lea.vmem [#allocation2], %s176
        // Predicated region
        $region29: #{tpu_custom_call.1} parent=27 // pred_check
          %p178 = pneg %p55
        $region30: #{tpu_custom_call.1} parent=27 // pred_check_branch
          %180 = sbr.rel (%p178) target = $region32
        $region31: #{tpu_custom_call.1} parent=27 // pred_region
          %181 = dma.done %s174, 49152
        $region32: #{tpu_custom_call.1} parent=27 // pred_fallthru
          _
        // Predicated region
        $region33: #{tpu_custom_call.1} parent=27 // pred_check
          %p182 = pneg %p81
        $region34: #{tpu_custom_call.1} parent=27 // pred_check_branch
          %184 = sbr.rel (%p182) target = $region36
        $region35: #{tpu_custom_call.1} parent=27 // pred_region
          %185 = dma.done [#allocation6], 96
        $region36: #{tpu_custom_call.1} parent=27 // pred_fallthru
          _
        %s186 = sand.u32 %s42, 1
        %s187 = scalar_lea.sflag [#allocation3], %s186
        %s188 = sand.u32 %s42, 1
        %s189 = smul.addr %s188, 3072
        %s190 = scalar_lea.vmem [#allocation2], %s189
        %p191 = pneg %p55
        %p192 = pneg %p52
        %p193 = pneg %p81
        %p194 = pneg %p78
        %p195 = pneg %p109
        %p196 = pneg %p106
        %s197 = sand.u32 %s96, 1
        %s198 = scalar_lea.sflag [#allocation4], %s197
        %s199 = sand.u32 %s96, 1
        %s200 = smul.addr %s199, 3072
        %s201 = scalar_lea.vmem [#allocation7], %s200
        %s202 = smul.u32 64, %s24
        %s203 = smul.u32 6, %s25
        %s204 = smul.u32 6, %s25
        %s205 = smul.u32 64, %s24
        %s206 = smul.u32 6, %s25
        %v207 = vld [vmem:[%s177] sm:$0xff]
        %v208 = vld [vmem:[%s177 + $0x8] sm:$0xff]
        %v209 = vld [vmem:[%s177 + $0x10] sm:$0xff]
        %v210 = vld [vmem:[%s177 + $0x18] sm:$0xff]
        %v211 = vld [vmem:[%s177 + $0x20] sm:$0xff]
        %v212 = vld [vmem:[%s177 + $0x28] sm:$0xff]
        %v213 = vld [vmem:[%s177 + $0x30] sm:$0xff]
        %v214 = vld [vmem:[%s177 + $0x38] sm:$0xff]
        %v215 = vld [vmem:[%s177 + $0x40] sm:$0xff]
        %v216 = vld [vmem:[%s177 + $0x48] sm:$0xff]
        %v217 = vld [vmem:[%s177 + $0x50] sm:$0xff]
        %v218 = vld [vmem:[%s177 + $0x58] sm:$0xff]
        %v219 = vld [vmem:[%s177 + $0x60] sm:$0xff]
        %v220 = vld [vmem:[%s177 + $0x68] sm:$0xff]
        %v221 = vld [vmem:[%s177 + $0x70] sm:$0xff]
        %v222 = vld [vmem:[%s177 + $0x78] sm:$0xff]
        %v223 = vld [vmem:[%s177 + $0x80] sm:$0xff]
        %v224 = vld [vmem:[%s177 + $0x88] sm:$0xff]
        %v225 = vld [vmem:[%s177 + $0x90] sm:$0xff]
        %v226 = vld [vmem:[%s177 + $0x98] sm:$0xff]
        %v227 = vld [vmem:[%s177 + $0xa0] sm:$0xff]
        %v228 = vld [vmem:[%s177 + $0xa8] sm:$0xff]
        %v229 = vld [vmem:[%s177 + $0xb0] sm:$0xff]
        %v230 = vld [vmem:[%s177 + $0xb8] sm:$0xff]
        %v231 = vld [vmem:[%s177 + $0xc0] sm:$0xff]
        %v232 = vld [vmem:[%s177 + $0xc8] sm:$0xff]
        %v233 = vld [vmem:[%s177 + $0xd0] sm:$0xff]
        %v234 = vld [vmem:[%s177 + $0xd8] sm:$0xff]
        %v235 = vld [vmem:[%s177 + $0xe0] sm:$0xff]
        %v236 = vld [vmem:[%s177 + $0xe8] sm:$0xff]
        %v237 = vld [vmem:[%s177 + $0xf0] sm:$0xff]
        %v238 = vld [vmem:[%s177 + $0xf8] sm:$0xff]
        %v239 = vld [vmem:[%s177 + $0x100] sm:$0xff]
        %v240 = vld [vmem:[%s177 + $0x108] sm:$0xff]
        %v241 = vld [vmem:[%s177 + $0x110] sm:$0xff]
        %v242 = vld [vmem:[%s177 + $0x118] sm:$0xff]
        %v243 = vld [vmem:[%s177 + $0x120] sm:$0xff]
        %v244 = vld [vmem:[%s177 + $0x128] sm:$0xff]
        %v245 = vld [vmem:[%s177 + $0x130] sm:$0xff]
        %v246 = vld [vmem:[%s177 + $0x138] sm:$0xff]
        %v247 = vld [vmem:[%s177 + $0x140] sm:$0xff]
        %v248 = vld [vmem:[%s177 + $0x148] sm:$0xff]
        %v249 = vld [vmem:[%s177 + $0x150] sm:$0xff]
        %v250 = vld [vmem:[%s177 + $0x158] sm:$0xff]
        %v251 = vld [vmem:[%s177 + $0x160] sm:$0xff]
        %v252 = vld [vmem:[%s177 + $0x168] sm:$0xff]
        %v253 = vld [vmem:[%s177 + $0x170] sm:$0xff]
        %v254 = vld [vmem:[%s177 + $0x178] sm:$0xff]
        %v255 = vld [vmem:[%s177 + $0x180] sm:$0xff]
        %v256 = vld [vmem:[%s177 + $0x188] sm:$0xff]
        %v257 = vld [vmem:[%s177 + $0x190] sm:$0xff]
        %v258 = vld [vmem:[%s177 + $0x198] sm:$0xff]
        %v259 = vld [vmem:[%s177 + $0x1a0] sm:$0xff]
        %v260 = vld [vmem:[%s177 + $0x1a8] sm:$0xff]
        %v261 = vld [vmem:[%s177 + $0x1b0] sm:$0xff]
        %v262 = vld [vmem:[%s177 + $0x1b8] sm:$0xff]
        %v263 = vld [vmem:[%s177 + $0x1c0] sm:$0xff]
        %v264 = vld [vmem:[%s177 + $0x1c8] sm:$0xff]
        %v265 = vld [vmem:[%s177 + $0x1d0] sm:$0xff]
        %v266 = vld [vmem:[%s177 + $0x1d8] sm:$0xff]
        %v267 = vld [vmem:[%s177 + $0x1e0] sm:$0xff]
        %v268 = vld [vmem:[%s177 + $0x1e8] sm:$0xff]
        %v269 = vld [vmem:[%s177 + $0x1f0] sm:$0xff]
        %v270 = vld [vmem:[%s177 + $0x1f8] sm:$0xff]
        %v271 = vld [vmem:[%s177 + $0x200] sm:$0xff]
        %v272 = vld [vmem:[%s177 + $0x208] sm:$0xff]
        %v273 = vld [vmem:[%s177 + $0x210] sm:$0xff]
        %v274 = vld [vmem:[%s177 + $0x218] sm:$0xff]
        %v275 = vld [vmem:[%s177 + $0x220] sm:$0xff]
        %v276 = vld [vmem:[%s177 + $0x228] sm:$0xff]
        %v277 = vld [vmem:[%s177 + $0x230] sm:$0xff]
        %v278 = vld [vmem:[%s177 + $0x238] sm:$0xff]
        %v279 = vld [vmem:[%s177 + $0x240] sm:$0xff]
        %v280 = vld [vmem:[%s177 + $0x248] sm:$0xff]
        %v281 = vld [vmem:[%s177 + $0x250] sm:$0xff]
        %v282 = vld [vmem:[%s177 + $0x258] sm:$0xff]
        %v283 = vld [vmem:[%s177 + $0x260] sm:$0xff]
        %v284 = vld [vmem:[%s177 + $0x268] sm:$0xff]
        %v285 = vld [vmem:[%s177 + $0x270] sm:$0xff]
        %v286 = vld [vmem:[%s177 + $0x278] sm:$0xff]
        %v287 = vld [vmem:[%s177 + $0x280] sm:$0xff]
        %v288 = vld [vmem:[%s177 + $0x288] sm:$0xff]
        %v289 = vld [vmem:[%s177 + $0x290] sm:$0xff]
        %v290 = vld [vmem:[%s177 + $0x298] sm:$0xff]
        %v291 = vld [vmem:[%s177 + $0x2a0] sm:$0xff]
        %v292 = vld [vmem:[%s177 + $0x2a8] sm:$0xff]
        %v293 = vld [vmem:[%s177 + $0x2b0] sm:$0xff]
        %v294 = vld [vmem:[%s177 + $0x2b8] sm:$0xff]
        %v295 = vld [vmem:[%s177 + $0x2c0] sm:$0xff]
        %v296 = vld [vmem:[%s177 + $0x2c8] sm:$0xff]
        %v297 = vld [vmem:[%s177 + $0x2d0] sm:$0xff]
        %v298 = vld [vmem:[%s177 + $0x2d8] sm:$0xff]
        %v299 = vld [vmem:[%s177 + $0x2e0] sm:$0xff]
        %v300 = vld [vmem:[%s177 + $0x2e8] sm:$0xff]
        %v301 = vld [vmem:[%s177 + $0x2f0] sm:$0xff]
        %v302 = vld [vmem:[%s177 + $0x2f8] sm:$0xff]
        %v303 = vld [vmem:[%s177 + $0x300] sm:$0xff]
        %v304 = vld [vmem:[%s177 + $0x308] sm:$0xff]
        %v305 = vld [vmem:[%s177 + $0x310] sm:$0xff]
        %v306 = vld [vmem:[%s177 + $0x318] sm:$0xff]
        %v307 = vld [vmem:[%s177 + $0x320] sm:$0xff]
        %v308 = vld [vmem:[%s177 + $0x328] sm:$0xff]
        %v309 = vld [vmem:[%s177 + $0x330] sm:$0xff]
        %v310 = vld [vmem:[%s177 + $0x338] sm:$0xff]
        %v311 = vld [vmem:[%s177 + $0x340] sm:$0xff]
        %v312 = vld [vmem:[%s177 + $0x348] sm:$0xff]
        %v313 = vld [vmem:[%s177 + $0x350] sm:$0xff]
        %v314 = vld [vmem:[%s177 + $0x358] sm:$0xff]
        %v315 = vld [vmem:[%s177 + $0x360] sm:$0xff]
        %v316 = vld [vmem:[%s177 + $0x368] sm:$0xff]
        %v317 = vld [vmem:[%s177 + $0x370] sm:$0xff]
        %v318 = vld [vmem:[%s177 + $0x378] sm:$0xff]
        %v319 = vld [vmem:[%s177 + $0x380] sm:$0xff]
        %v320 = vld [vmem:[%s177 + $0x388] sm:$0xff]
        %v321 = vld [vmem:[%s177 + $0x390] sm:$0xff]
        %v322 = vld [vmem:[%s177 + $0x398] sm:$0xff]
        %v323 = vld [vmem:[%s177 + $0x3a0] sm:$0xff]
        %v324 = vld [vmem:[%s177 + $0x3a8] sm:$0xff]
        %v325 = vld [vmem:[%s177 + $0x3b0] sm:$0xff]
        %v326 = vld [vmem:[%s177 + $0x3b8] sm:$0xff]
        %v327 = vld [vmem:[%s177 + $0x3c0] sm:$0xff]
        %v328 = vld [vmem:[%s177 + $0x3c8] sm:$0xff]
        %v329 = vld [vmem:[%s177 + $0x3d0] sm:$0xff]
        %v330 = vld [vmem:[%s177 + $0x3d8] sm:$0xff]
        %v331 = vld [vmem:[%s177 + $0x3e0] sm:$0xff]
        %v332 = vld [vmem:[%s177 + $0x3e8] sm:$0xff]
        %v333 = vld [vmem:[%s177 + $0x3f0] sm:$0xff]
        %v334 = vld [vmem:[%s177 + $0x3f8] sm:$0xff]
        %v335 = vld [vmem:[%s177 + $0x400] sm:$0xff]
        %v336 = vld [vmem:[%s177 + $0x408] sm:$0xff]
        %v337 = vld [vmem:[%s177 + $0x410] sm:$0xff]
        %v338 = vld [vmem:[%s177 + $0x418] sm:$0xff]
        %v339 = vld [vmem:[%s177 + $0x420] sm:$0xff]
        %v340 = vld [vmem:[%s177 + $0x428] sm:$0xff]
        %v341 = vld [vmem:[%s177 + $0x430] sm:$0xff]
        %v342 = vld [vmem:[%s177 + $0x438] sm:$0xff]
        %v343 = vld [vmem:[%s177 + $0x440] sm:$0xff]
        %v344 = vld [vmem:[%s177 + $0x448] sm:$0xff]
        %v345 = vld [vmem:[%s177 + $0x450] sm:$0xff]
        %v346 = vld [vmem:[%s177 + $0x458] sm:$0xff]
        %v347 = vld [vmem:[%s177 + $0x460] sm:$0xff]
        %v348 = vld [vmem:[%s177 + $0x468] sm:$0xff]
        %v349 = vld [vmem:[%s177 + $0x470] sm:$0xff]
        %v350 = vld [vmem:[%s177 + $0x478] sm:$0xff]
        %v351 = vld [vmem:[%s177 + $0x480] sm:$0xff]
        %v352 = vld [vmem:[%s177 + $0x488] sm:$0xff]
        %v353 = vld [vmem:[%s177 + $0x490] sm:$0xff]
        %v354 = vld [vmem:[%s177 + $0x498] sm:$0xff]
        %v355 = vld [vmem:[%s177 + $0x4a0] sm:$0xff]
        %v356 = vld [vmem:[%s177 + $0x4a8] sm:$0xff]
        %v357 = vld [vmem:[%s177 + $0x4b0] sm:$0xff]
        %v358 = vld [vmem:[%s177 + $0x4b8] sm:$0xff]
        %v359 = vld [vmem:[%s177 + $0x4c0] sm:$0xff]
        %v360 = vld [vmem:[%s177 + $0x4c8] sm:$0xff]
        %v361 = vld [vmem:[%s177 + $0x4d0] sm:$0xff]
        %v362 = vld [vmem:[%s177 + $0x4d8] sm:$0xff]
        %v363 = vld [vmem:[%s177 + $0x4e0] sm:$0xff]
        %v364 = vld [vmem:[%s177 + $0x4e8] sm:$0xff]
        %v365 = vld [vmem:[%s177 + $0x4f0] sm:$0xff]
        %v366 = vld [vmem:[%s177 + $0x4f8] sm:$0xff]
        %v367 = vld [vmem:[%s177 + $0x500] sm:$0xff]
        %v368 = vld [vmem:[%s177 + $0x508] sm:$0xff]
        %v369 = vld [vmem:[%s177 + $0x510] sm:$0xff]
        %v370 = vld [vmem:[%s177 + $0x518] sm:$0xff]
        %v371 = vld [vmem:[%s177 + $0x520] sm:$0xff]
        %v372 = vld [vmem:[%s177 + $0x528] sm:$0xff]
        %v373 = vld [vmem:[%s177 + $0x530] sm:$0xff]
        %v374 = vld [vmem:[%s177 + $0x538] sm:$0xff]
        %v375 = vld [vmem:[%s177 + $0x540] sm:$0xff]
        %v376 = vld [vmem:[%s177 + $0x548] sm:$0xff]
        %v377 = vld [vmem:[%s177 + $0x550] sm:$0xff]
        %v378 = vld [vmem:[%s177 + $0x558] sm:$0xff]
        %v379 = vld [vmem:[%s177 + $0x560] sm:$0xff]
        %v380 = vld [vmem:[%s177 + $0x568] sm:$0xff]
        %v381 = vld [vmem:[%s177 + $0x570] sm:$0xff]
        %v382 = vld [vmem:[%s177 + $0x578] sm:$0xff]
        %v383 = vld [vmem:[%s177 + $0x580] sm:$0xff]
        %v384 = vld [vmem:[%s177 + $0x588] sm:$0xff]
        %v385 = vld [vmem:[%s177 + $0x590] sm:$0xff]
        %v386 = vld [vmem:[%s177 + $0x598] sm:$0xff]
        %v387 = vld [vmem:[%s177 + $0x5a0] sm:$0xff]
        %v388 = vld [vmem:[%s177 + $0x5a8] sm:$0xff]
        %v389 = vld [vmem:[%s177 + $0x5b0] sm:$0xff]
        %v390 = vld [vmem:[%s177 + $0x5b8] sm:$0xff]
        %v391 = vld [vmem:[%s177 + $0x5c0] sm:$0xff]
        %v392 = vld [vmem:[%s177 + $0x5c8] sm:$0xff]
        %v393 = vld [vmem:[%s177 + $0x5d0] sm:$0xff]
        %v394 = vld [vmem:[%s177 + $0x5d8] sm:$0xff]
        %v395 = vld [vmem:[%s177 + $0x5e0] sm:$0xff]
        %v396 = vld [vmem:[%s177 + $0x5e8] sm:$0xff]
        %v397 = vld [vmem:[%s177 + $0x5f0] sm:$0xff]
        %v398 = vld [vmem:[%s177 + $0x5f8] sm:$0xff]
        %v399 = vld [vmem:[%s177 + $0x600] sm:$0xff]
        %v400 = vld [vmem:[%s177 + $0x608] sm:$0xff]
        %v401 = vld [vmem:[%s177 + $0x610] sm:$0xff]
        %v402 = vld [vmem:[%s177 + $0x618] sm:$0xff]
        %v403 = vld [vmem:[%s177 + $0x620] sm:$0xff]
        %v404 = vld [vmem:[%s177 + $0x628] sm:$0xff]
        %v405 = vld [vmem:[%s177 + $0x630] sm:$0xff]
        %v406 = vld [vmem:[%s177 + $0x638] sm:$0xff]
        %v407 = vld [vmem:[%s177 + $0x640] sm:$0xff]
        %v408 = vld [vmem:[%s177 + $0x648] sm:$0xff]
        %v409 = vld [vmem:[%s177 + $0x650] sm:$0xff]
        %v410 = vld [vmem:[%s177 + $0x658] sm:$0xff]
        %v411 = vld [vmem:[%s177 + $0x660] sm:$0xff]
        %v412 = vld [vmem:[%s177 + $0x668] sm:$0xff]
        %v413 = vld [vmem:[%s177 + $0x670] sm:$0xff]
        %v414 = vld [vmem:[%s177 + $0x678] sm:$0xff]
        %v415 = vld [vmem:[%s177 + $0x680] sm:$0xff]
        %v416 = vld [vmem:[%s177 + $0x688] sm:$0xff]
        %v417 = vld [vmem:[%s177 + $0x690] sm:$0xff]
        %v418 = vld [vmem:[%s177 + $0x698] sm:$0xff]
        %v419 = vld [vmem:[%s177 + $0x6a0] sm:$0xff]
        %v420 = vld [vmem:[%s177 + $0x6a8] sm:$0xff]
        %v421 = vld [vmem:[%s177 + $0x6b0] sm:$0xff]
        %v422 = vld [vmem:[%s177 + $0x6b8] sm:$0xff]
        %v423 = vld [vmem:[%s177 + $0x6c0] sm:$0xff]
        %v424 = vld [vmem:[%s177 + $0x6c8] sm:$0xff]
        %v425 = vld [vmem:[%s177 + $0x6d0] sm:$0xff]
        %v426 = vld [vmem:[%s177 + $0x6d8] sm:$0xff]
        %v427 = vld [vmem:[%s177 + $0x6e0] sm:$0xff]
        %v428 = vld [vmem:[%s177 + $0x6e8] sm:$0xff]
        %v429 = vld [vmem:[%s177 + $0x6f0] sm:$0xff]
        %v430 = vld [vmem:[%s177 + $0x6f8] sm:$0xff]
        %v431 = vld [vmem:[%s177 + $0x700] sm:$0xff]
        %v432 = vld [vmem:[%s177 + $0x708] sm:$0xff]
        %v433 = vld [vmem:[%s177 + $0x710] sm:$0xff]
        %v434 = vld [vmem:[%s177 + $0x718] sm:$0xff]
        %v435 = vld [vmem:[%s177 + $0x720] sm:$0xff]
        %v436 = vld [vmem:[%s177 + $0x728] sm:$0xff]
        %v437 = vld [vmem:[%s177 + $0x730] sm:$0xff]
        %v438 = vld [vmem:[%s177 + $0x738] sm:$0xff]
        %v439 = vld [vmem:[%s177 + $0x740] sm:$0xff]
        %v440 = vld [vmem:[%s177 + $0x748] sm:$0xff]
        %v441 = vld [vmem:[%s177 + $0x750] sm:$0xff]
        %v442 = vld [vmem:[%s177 + $0x758] sm:$0xff]
        %v443 = vld [vmem:[%s177 + $0x760] sm:$0xff]
        %v444 = vld [vmem:[%s177 + $0x768] sm:$0xff]
        %v445 = vld [vmem:[%s177 + $0x770] sm:$0xff]
        %v446 = vld [vmem:[%s177 + $0x778] sm:$0xff]
        %v447 = vld [vmem:[%s177 + $0x780] sm:$0xff]
        %v448 = vld [vmem:[%s177 + $0x788] sm:$0xff]
        %v449 = vld [vmem:[%s177 + $0x790] sm:$0xff]
        %v450 = vld [vmem:[%s177 + $0x798] sm:$0xff]
        %v451 = vld [vmem:[%s177 + $0x7a0] sm:$0xff]
        %v452 = vld [vmem:[%s177 + $0x7a8] sm:$0xff]
        %v453 = vld [vmem:[%s177 + $0x7b0] sm:$0xff]
        %v454 = vld [vmem:[%s177 + $0x7b8] sm:$0xff]
        %v455 = vld [vmem:[%s177 + $0x7c0] sm:$0xff]
        %v456 = vld [vmem:[%s177 + $0x7c8] sm:$0xff]
        %v457 = vld [vmem:[%s177 + $0x7d0] sm:$0xff]
        %v458 = vld [vmem:[%s177 + $0x7d8] sm:$0xff]
        %v459 = vld [vmem:[%s177 + $0x7e0] sm:$0xff]
        %v460 = vld [vmem:[%s177 + $0x7e8] sm:$0xff]
        %v461 = vld [vmem:[%s177 + $0x7f0] sm:$0xff]
        %v462 = vld [vmem:[%s177 + $0x7f8] sm:$0xff]
        %v463 = vld [vmem:[%s177 + $0x800] sm:$0xff]
        %v464 = vld [vmem:[%s177 + $0x808] sm:$0xff]
        %v465 = vld [vmem:[%s177 + $0x810] sm:$0xff]
        %v466 = vld [vmem:[%s177 + $0x818] sm:$0xff]
        %v467 = vld [vmem:[%s177 + $0x820] sm:$0xff]
        %v468 = vld [vmem:[%s177 + $0x828] sm:$0xff]
        %v469 = vld [vmem:[%s177 + $0x830] sm:$0xff]
        %v470 = vld [vmem:[%s177 + $0x838] sm:$0xff]
        %v471 = vld [vmem:[%s177 + $0x840] sm:$0xff]
        %v472 = vld [vmem:[%s177 + $0x848] sm:$0xff]
        %v473 = vld [vmem:[%s177 + $0x850] sm:$0xff]
        %v474 = vld [vmem:[%s177 + $0x858] sm:$0xff]
        %v475 = vld [vmem:[%s177 + $0x860] sm:$0xff]
        %v476 = vld [vmem:[%s177 + $0x868] sm:$0xff]
        %v477 = vld [vmem:[%s177 + $0x870] sm:$0xff]
        %v478 = vld [vmem:[%s177 + $0x878] sm:$0xff]
        %v479 = vld [vmem:[%s177 + $0x880] sm:$0xff]
        %v480 = vld [vmem:[%s177 + $0x888] sm:$0xff]
        %v481 = vld [vmem:[%s177 + $0x890] sm:$0xff]
        %v482 = vld [vmem:[%s177 + $0x898] sm:$0xff]
        %v483 = vld [vmem:[%s177 + $0x8a0] sm:$0xff]
        %v484 = vld [vmem:[%s177 + $0x8a8] sm:$0xff]
        %v485 = vld [vmem:[%s177 + $0x8b0] sm:$0xff]
        %v486 = vld [vmem:[%s177 + $0x8b8] sm:$0xff]
        %v487 = vld [vmem:[%s177 + $0x8c0] sm:$0xff]
        %v488 = vld [vmem:[%s177 + $0x8c8] sm:$0xff]
        %v489 = vld [vmem:[%s177 + $0x8d0] sm:$0xff]
        %v490 = vld [vmem:[%s177 + $0x8d8] sm:$0xff]
        %v491 = vld [vmem:[%s177 + $0x8e0] sm:$0xff]
        %v492 = vld [vmem:[%s177 + $0x8e8] sm:$0xff]
        %v493 = vld [vmem:[%s177 + $0x8f0] sm:$0xff]
        %v494 = vld [vmem:[%s177 + $0x8f8] sm:$0xff]
        %v495 = vld [vmem:[%s177 + $0x900] sm:$0xff]
        %v496 = vld [vmem:[%s177 + $0x908] sm:$0xff]
        %v497 = vld [vmem:[%s177 + $0x910] sm:$0xff]
        %v498 = vld [vmem:[%s177 + $0x918] sm:$0xff]
        %v499 = vld [vmem:[%s177 + $0x920] sm:$0xff]
        %v500 = vld [vmem:[%s177 + $0x928] sm:$0xff]
        %v501 = vld [vmem:[%s177 + $0x930] sm:$0xff]
        %v502 = vld [vmem:[%s177 + $0x938] sm:$0xff]
        %v503 = vld [vmem:[%s177 + $0x940] sm:$0xff]
        %v504 = vld [vmem:[%s177 + $0x948] sm:$0xff]
        %v505 = vld [vmem:[%s177 + $0x950] sm:$0xff]
        %v506 = vld [vmem:[%s177 + $0x958] sm:$0xff]
        %v507 = vld [vmem:[%s177 + $0x960] sm:$0xff]
        %v508 = vld [vmem:[%s177 + $0x968] sm:$0xff]
        %v509 = vld [vmem:[%s177 + $0x970] sm:$0xff]
        %v510 = vld [vmem:[%s177 + $0x978] sm:$0xff]
        %v511 = vld [vmem:[%s177 + $0x980] sm:$0xff]
        %v512 = vld [vmem:[%s177 + $0x988] sm:$0xff]
        %v513 = vld [vmem:[%s177 + $0x990] sm:$0xff]
        %v514 = vld [vmem:[%s177 + $0x998] sm:$0xff]
        %v515 = vld [vmem:[%s177 + $0x9a0] sm:$0xff]
        %v516 = vld [vmem:[%s177 + $0x9a8] sm:$0xff]
        %v517 = vld [vmem:[%s177 + $0x9b0] sm:$0xff]
        %v518 = vld [vmem:[%s177 + $0x9b8] sm:$0xff]
        %v519 = vld [vmem:[%s177 + $0x9c0] sm:$0xff]
        %v520 = vld [vmem:[%s177 + $0x9c8] sm:$0xff]
        %v521 = vld [vmem:[%s177 + $0x9d0] sm:$0xff]
        %v522 = vld [vmem:[%s177 + $0x9d8] sm:$0xff]
        %v523 = vld [vmem:[%s177 + $0x9e0] sm:$0xff]
        %v524 = vld [vmem:[%s177 + $0x9e8] sm:$0xff]
        %v525 = vld [vmem:[%s177 + $0x9f0] sm:$0xff]
        %v526 = vld [vmem:[%s177 + $0x9f8] sm:$0xff]
        %v527 = vld [vmem:[%s177 + $0xa00] sm:$0xff]
        %v528 = vld [vmem:[%s177 + $0xa08] sm:$0xff]
        %v529 = vld [vmem:[%s177 + $0xa10] sm:$0xff]
        %v530 = vld [vmem:[%s177 + $0xa18] sm:$0xff]
        %v531 = vld [vmem:[%s177 + $0xa20] sm:$0xff]
        %v532 = vld [vmem:[%s177 + $0xa28] sm:$0xff]
        %v533 = vld [vmem:[%s177 + $0xa30] sm:$0xff]
        %v534 = vld [vmem:[%s177 + $0xa38] sm:$0xff]
        %v535 = vld [vmem:[%s177 + $0xa40] sm:$0xff]
        %v536 = vld [vmem:[%s177 + $0xa48] sm:$0xff]
        %v537 = vld [vmem:[%s177 + $0xa50] sm:$0xff]
        %v538 = vld [vmem:[%s177 + $0xa58] sm:$0xff]
        %v539 = vld [vmem:[%s177 + $0xa60] sm:$0xff]
        %v540 = vld [vmem:[%s177 + $0xa68] sm:$0xff]
        %v541 = vld [vmem:[%s177 + $0xa70] sm:$0xff]
        %v542 = vld [vmem:[%s177 + $0xa78] sm:$0xff]
        %v543 = vld [vmem:[%s177 + $0xa80] sm:$0xff]
        %v544 = vld [vmem:[%s177 + $0xa88] sm:$0xff]
        %v545 = vld [vmem:[%s177 + $0xa90] sm:$0xff]
        %v546 = vld [vmem:[%s177 + $0xa98] sm:$0xff]
        %v547 = vld [vmem:[%s177 + $0xaa0] sm:$0xff]
        %v548 = vld [vmem:[%s177 + $0xaa8] sm:$0xff]
        %v549 = vld [vmem:[%s177 + $0xab0] sm:$0xff]
        %v550 = vld [vmem:[%s177 + $0xab8] sm:$0xff]
        %v551 = vld [vmem:[%s177 + $0xac0] sm:$0xff]
        %v552 = vld [vmem:[%s177 + $0xac8] sm:$0xff]
        %v553 = vld [vmem:[%s177 + $0xad0] sm:$0xff]
        %v554 = vld [vmem:[%s177 + $0xad8] sm:$0xff]
        %v555 = vld [vmem:[%s177 + $0xae0] sm:$0xff]
        %v556 = vld [vmem:[%s177 + $0xae8] sm:$0xff]
        %v557 = vld [vmem:[%s177 + $0xaf0] sm:$0xff]
        %v558 = vld [vmem:[%s177 + $0xaf8] sm:$0xff]
        %v559 = vld [vmem:[%s177 + $0xb00] sm:$0xff]
        %v560 = vld [vmem:[%s177 + $0xb08] sm:$0xff]
        %v561 = vld [vmem:[%s177 + $0xb10] sm:$0xff]
        %v562 = vld [vmem:[%s177 + $0xb18] sm:$0xff]
        %v563 = vld [vmem:[%s177 + $0xb20] sm:$0xff]
        %v564 = vld [vmem:[%s177 + $0xb28] sm:$0xff]
        %v565 = vld [vmem:[%s177 + $0xb30] sm:$0xff]
        %v566 = vld [vmem:[%s177 + $0xb38] sm:$0xff]
        %v567 = vld [vmem:[%s177 + $0xb40] sm:$0xff]
        %v568 = vld [vmem:[%s177 + $0xb48] sm:$0xff]
        %v569 = vld [vmem:[%s177 + $0xb50] sm:$0xff]
        %v570 = vld [vmem:[%s177 + $0xb58] sm:$0xff]
        %v571 = vld [vmem:[%s177 + $0xb60] sm:$0xff]
        %v572 = vld [vmem:[%s177 + $0xb68] sm:$0xff]
        %v573 = vld [vmem:[%s177 + $0xb70] sm:$0xff]
        %v574 = vld [vmem:[%s177 + $0xb78] sm:$0xff]
        %v575 = vld [vmem:[%s177 + $0xb80] sm:$0xff]
        %v576 = vld [vmem:[%s177 + $0xb88] sm:$0xff]
        %v577 = vld [vmem:[%s177 + $0xb90] sm:$0xff]
        %v578 = vld [vmem:[%s177 + $0xb98] sm:$0xff]
        %v579 = vld [vmem:[%s177 + $0xba0] sm:$0xff]
        %v580 = vld [vmem:[%s177 + $0xba8] sm:$0xff]
        %v581 = vld [vmem:[%s177 + $0xbb0] sm:$0xff]
        %v582 = vld [vmem:[%s177 + $0xbb8] sm:$0xff]
        %v583 = vld [vmem:[%s177 + $0xbc0] sm:$0xff]
        %v584 = vld [vmem:[%s177 + $0xbc8] sm:$0xff]
        %v585 = vld [vmem:[%s177 + $0xbd0] sm:$0xff]
        %v586 = vld [vmem:[%s177 + $0xbd8] sm:$0xff]
        %v587 = vld [vmem:[%s177 + $0xbe0] sm:$0xff]
        %v588 = vld [vmem:[%s177 + $0xbe8] sm:$0xff]
        %v589 = vld [vmem:[%s177 + $0xbf0] sm:$0xff]
        %v590 = vld [vmem:[%s177 + $0xbf8] sm:$0xff]
        %v591 = vld [vmem:[#allocation5] sm:$0x3f]
        %v593 = vlaneseq
        %v594 = vshrl.u32 %v593, 7
        %v595 = vsub.s32 0, %v594
        %v596 = vrot.slane %v591, %v595
        %v597 = vlaneseq
        %v598 = vshrl.u32 %v597, 7
        %v599 = vsub.s32 1, %v598
        %v600 = vrot.slane %v591, %v599
        %v601 = vlaneseq
        %v602 = vshrl.u32 %v601, 7
        %v603 = vsub.s32 2, %v602
        %v604 = vrot.slane %v591, %v603
        %v605 = vlaneseq
        %v606 = vshrl.u32 %v605, 7
        %v607 = vsub.s32 3, %v606
        %v608 = vrot.slane %v591, %v607
        %v609 = vlaneseq
        %v610 = vshrl.u32 %v609, 7
        %v611 = vsub.s32 4, %v610
        %v612 = vrot.slane %v591, %v611
        %v613 = vlaneseq
        %v614 = vshrl.u32 %v613, 7
        %v615 = vsub.s32 5, %v614
        %v616 = vrot.slane %v591, %v615
        %v623 = vadd.f32 %v207, %v596
        %v624 = vadd.f32 %v208, %v600
        %v625 = vadd.f32 %v209, %v604
        %v626 = vadd.f32 %v210, %v608
        %v627 = vadd.f32 %v211, %v612
        %v628 = vadd.f32 %v212, %v616
        %v629 = vadd.f32 %v213, %v596
        %v630 = vadd.f32 %v214, %v600
        %v631 = vadd.f32 %v215, %v604
        %v632 = vadd.f32 %v216, %v608
        %v633 = vadd.f32 %v217, %v612
        %v634 = vadd.f32 %v218, %v616
        %v635 = vadd.f32 %v219, %v596
        %v636 = vadd.f32 %v220, %v600
        %v637 = vadd.f32 %v221, %v604
        %v638 = vadd.f32 %v222, %v608
        %v639 = vadd.f32 %v223, %v612
        %v640 = vadd.f32 %v224, %v616
        %v641 = vadd.f32 %v225, %v596
        %v642 = vadd.f32 %v226, %v600
        %v643 = vadd.f32 %v227, %v604
        %v644 = vadd.f32 %v228, %v608
        %v645 = vadd.f32 %v229, %v612
        %v646 = vadd.f32 %v230, %v616
        %v647 = vadd.f32 %v231, %v596
        %v648 = vadd.f32 %v232, %v600
        %v649 = vadd.f32 %v233, %v604
        %v650 = vadd.f32 %v234, %v608
        %v651 = vadd.f32 %v235, %v612
        %v652 = vadd.f32 %v236, %v616
        %v653 = vadd.f32 %v237, %v596
        %v654 = vadd.f32 %v238, %v600
        %v655 = vadd.f32 %v239, %v604
        %v656 = vadd.f32 %v240, %v608
        %v657 = vadd.f32 %v241, %v612
        %v658 = vadd.f32 %v242, %v616
        %v659 = vadd.f32 %v243, %v596
        %v660 = vadd.f32 %v244, %v600
        %v661 = vadd.f32 %v245, %v604
        %v662 = vadd.f32 %v246, %v608
        %v663 = vadd.f32 %v247, %v612
        %v664 = vadd.f32 %v248, %v616
        %v665 = vadd.f32 %v249, %v596
        %v666 = vadd.f32 %v250, %v600
        %v667 = vadd.f32 %v251, %v604
        %v668 = vadd.f32 %v252, %v608
        %v669 = vadd.f32 %v253, %v612
        %v670 = vadd.f32 %v254, %v616
        %v671 = vadd.f32 %v255, %v596
        %v672 = vadd.f32 %v256, %v600
        %v673 = vadd.f32 %v257, %v604
        %v674 = vadd.f32 %v258, %v608
        %v675 = vadd.f32 %v259, %v612
        %v676 = vadd.f32 %v260, %v616
        %v677 = vadd.f32 %v261, %v596
        %v678 = vadd.f32 %v262, %v600
        %v679 = vadd.f32 %v263, %v604
        %v680 = vadd.f32 %v264, %v608
        %v681 = vadd.f32 %v265, %v612
        %v682 = vadd.f32 %v266, %v616
        %v683 = vadd.f32 %v267, %v596
        %v684 = vadd.f32 %v268, %v600
        %v685 = vadd.f32 %v269, %v604
        %v686 = vadd.f32 %v270, %v608
        %v687 = vadd.f32 %v271, %v612
        %v688 = vadd.f32 %v272, %v616
        %v689 = vadd.f32 %v273, %v596
        %v690 = vadd.f32 %v274, %v600
        %v691 = vadd.f32 %v275, %v604
        %v692 = vadd.f32 %v276, %v608
        %v693 = vadd.f32 %v277, %v612
        %v694 = vadd.f32 %v278, %v616
        %v695 = vadd.f32 %v279, %v596
        %v696 = vadd.f32 %v280, %v600
        %v697 = vadd.f32 %v281, %v604
        %v698 = vadd.f32 %v282, %v608
        %v699 = vadd.f32 %v283, %v612
        %v700 = vadd.f32 %v284, %v616
        %v701 = vadd.f32 %v285, %v596
        %v702 = vadd.f32 %v286, %v600
        %v703 = vadd.f32 %v287, %v604
        %v704 = vadd.f32 %v288, %v608
        %v705 = vadd.f32 %v289, %v612
        %v706 = vadd.f32 %v290, %v616
        %v707 = vadd.f32 %v291, %v596
        %v708 = vadd.f32 %v292, %v600
        %v709 = vadd.f32 %v293, %v604
        %v710 = vadd.f32 %v294, %v608
        %v711 = vadd.f32 %v295, %v612
        %v712 = vadd.f32 %v296, %v616
        %v713 = vadd.f32 %v297, %v596
        %v714 = vadd.f32 %v298, %v600
        %v715 = vadd.f32 %v299, %v604
        %v716 = vadd.f32 %v300, %v608
        %v717 = vadd.f32 %v301, %v612
        %v718 = vadd.f32 %v302, %v616
        %v719 = vadd.f32 %v303, %v596
        %v720 = vadd.f32 %v304, %v600
        %v721 = vadd.f32 %v305, %v604
        %v722 = vadd.f32 %v306, %v608
        %v723 = vadd.f32 %v307, %v612
        %v724 = vadd.f32 %v308, %v616
        %v725 = vadd.f32 %v309, %v596
        %v726 = vadd.f32 %v310, %v600
        %v727 = vadd.f32 %v311, %v604
        %v728 = vadd.f32 %v312, %v608
        %v729 = vadd.f32 %v313, %v612
        %v730 = vadd.f32 %v314, %v616
        %v731 = vadd.f32 %v315, %v596
        %v732 = vadd.f32 %v316, %v600
        %v733 = vadd.f32 %v317, %v604
        %v734 = vadd.f32 %v318, %v608
        %v735 = vadd.f32 %v319, %v612
        %v736 = vadd.f32 %v320, %v616
        %v737 = vadd.f32 %v321, %v596
        %v738 = vadd.f32 %v322, %v600
        %v739 = vadd.f32 %v323, %v604
        %v740 = vadd.f32 %v324, %v608
        %v741 = vadd.f32 %v325, %v612
        %v742 = vadd.f32 %v326, %v616
        %v743 = vadd.f32 %v327, %v596
        %v744 = vadd.f32 %v328, %v600
        %v745 = vadd.f32 %v329, %v604
        %v746 = vadd.f32 %v330, %v608
        %v747 = vadd.f32 %v331, %v612
        %v748 = vadd.f32 %v332, %v616
        %v749 = vadd.f32 %v333, %v596
        %v750 = vadd.f32 %v334, %v600
        %v751 = vadd.f32 %v335, %v604
        %v752 = vadd.f32 %v336, %v608
        %v753 = vadd.f32 %v337, %v612
        %v754 = vadd.f32 %v338, %v616
        %v755 = vadd.f32 %v339, %v596
        %v756 = vadd.f32 %v340, %v600
        %v757 = vadd.f32 %v341, %v604
        %v758 = vadd.f32 %v342, %v608
        %v759 = vadd.f32 %v343, %v612
        %v760 = vadd.f32 %v344, %v616
        %v761 = vadd.f32 %v345, %v596
        %v762 = vadd.f32 %v346, %v600
        %v763 = vadd.f32 %v347, %v604
        %v764 = vadd.f32 %v348, %v608
        %v765 = vadd.f32 %v349, %v612
        %v766 = vadd.f32 %v350, %v616
        %v767 = vadd.f32 %v351, %v596
        %v768 = vadd.f32 %v352, %v600
        %v769 = vadd.f32 %v353, %v604
        %v770 = vadd.f32 %v354, %v608
        %v771 = vadd.f32 %v355, %v612
        %v772 = vadd.f32 %v356, %v616
        %v773 = vadd.f32 %v357, %v596
        %v774 = vadd.f32 %v358, %v600
        %v775 = vadd.f32 %v359, %v604
        %v776 = vadd.f32 %v360, %v608
        %v777 = vadd.f32 %v361, %v612
        %v778 = vadd.f32 %v362, %v616
        %v779 = vadd.f32 %v363, %v596
        %v780 = vadd.f32 %v364, %v600
        %v781 = vadd.f32 %v365, %v604
        %v782 = vadd.f32 %v366, %v608
        %v783 = vadd.f32 %v367, %v612
        %v784 = vadd.f32 %v368, %v616
        %v785 = vadd.f32 %v369, %v596
        %v786 = vadd.f32 %v370, %v600
        %v787 = vadd.f32 %v371, %v604
        %v788 = vadd.f32 %v372, %v608
        %v789 = vadd.f32 %v373, %v612
        %v790 = vadd.f32 %v374, %v616
        %v791 = vadd.f32 %v375, %v596
        %v792 = vadd.f32 %v376, %v600
        %v793 = vadd.f32 %v377, %v604
        %v794 = vadd.f32 %v378, %v608
        %v795 = vadd.f32 %v379, %v612
        %v796 = vadd.f32 %v380, %v616
        %v797 = vadd.f32 %v381, %v596
        %v798 = vadd.f32 %v382, %v600
        %v799 = vadd.f32 %v383, %v604
        %v800 = vadd.f32 %v384, %v608
        %v801 = vadd.f32 %v385, %v612
        %v802 = vadd.f32 %v386, %v616
        %v803 = vadd.f32 %v387, %v596
        %v804 = vadd.f32 %v388, %v600
        %v805 = vadd.f32 %v389, %v604
        %v806 = vadd.f32 %v390, %v608
        %v807 = vadd.f32 %v391, %v612
        %v808 = vadd.f32 %v392, %v616
        %v809 = vadd.f32 %v393, %v596
        %v810 = vadd.f32 %v394, %v600
        %v811 = vadd.f32 %v395, %v604
        %v812 = vadd.f32 %v396, %v608
        %v813 = vadd.f32 %v397, %v612
        %v814 = vadd.f32 %v398, %v616
        %v815 = vadd.f32 %v399, %v596
        %v816 = vadd.f32 %v400, %v600
        %v817 = vadd.f32 %v401, %v604
        %v818 = vadd.f32 %v402, %v608
        %v819 = vadd.f32 %v403, %v612
        %v820 = vadd.f32 %v404, %v616
        %v821 = vadd.f32 %v405, %v596
        %v822 = vadd.f32 %v406, %v600
        %v823 = vadd.f32 %v407, %v604
        %v824 = vadd.f32 %v408, %v608
        %v825 = vadd.f32 %v409, %v612
        %v826 = vadd.f32 %v410, %v616
        %v827 = vadd.f32 %v411, %v596
        %v828 = vadd.f32 %v412, %v600
        %v829 = vadd.f32 %v413, %v604
        %v830 = vadd.f32 %v414, %v608
        %v831 = vadd.f32 %v415, %v612
        %v832 = vadd.f32 %v416, %v616
        %v833 = vadd.f32 %v417, %v596
        %v834 = vadd.f32 %v418, %v600
        %v835 = vadd.f32 %v419, %v604
        %v836 = vadd.f32 %v420, %v608
        %v837 = vadd.f32 %v421, %v612
        %v838 = vadd.f32 %v422, %v616
        %v839 = vadd.f32 %v423, %v596
        %v840 = vadd.f32 %v424, %v600
        %v841 = vadd.f32 %v425, %v604
        %v842 = vadd.f32 %v426, %v608
        %v843 = vadd.f32 %v427, %v612
        %v844 = vadd.f32 %v428, %v616
        %v845 = vadd.f32 %v429, %v596
        %v846 = vadd.f32 %v430, %v600
        %v847 = vadd.f32 %v431, %v604
        %v848 = vadd.f32 %v432, %v608
        %v849 = vadd.f32 %v433, %v612
        %v850 = vadd.f32 %v434, %v616
        %v851 = vadd.f32 %v435, %v596
        %v852 = vadd.f32 %v436, %v600
        %v853 = vadd.f32 %v437, %v604
        %v854 = vadd.f32 %v438, %v608
        %v855 = vadd.f32 %v439, %v612
        %v856 = vadd.f32 %v440, %v616
        %v857 = vadd.f32 %v441, %v596
        %v858 = vadd.f32 %v442, %v600
        %v859 = vadd.f32 %v443, %v604
        %v860 = vadd.f32 %v444, %v608
        %v861 = vadd.f32 %v445, %v612
        %v862 = vadd.f32 %v446, %v616
        %v863 = vadd.f32 %v447, %v596
        %v864 = vadd.f32 %v448, %v600
        %v865 = vadd.f32 %v449, %v604
        %v866 = vadd.f32 %v450, %v608
        %v867 = vadd.f32 %v451, %v612
        %v868 = vadd.f32 %v452, %v616
        %v869 = vadd.f32 %v453, %v596
        %v870 = vadd.f32 %v454, %v600
        %v871 = vadd.f32 %v455, %v604
        %v872 = vadd.f32 %v456, %v608
        %v873 = vadd.f32 %v457, %v612
        %v874 = vadd.f32 %v458, %v616
        %v875 = vadd.f32 %v459, %v596
        %v876 = vadd.f32 %v460, %v600
        %v877 = vadd.f32 %v461, %v604
        %v878 = vadd.f32 %v462, %v608
        %v879 = vadd.f32 %v463, %v612
        %v880 = vadd.f32 %v464, %v616
        %v881 = vadd.f32 %v465, %v596
        %v882 = vadd.f32 %v466, %v600
        %v883 = vadd.f32 %v467, %v604
        %v884 = vadd.f32 %v468, %v608
        %v885 = vadd.f32 %v469, %v612
        %v886 = vadd.f32 %v470, %v616
        %v887 = vadd.f32 %v471, %v596
        %v888 = vadd.f32 %v472, %v600
        %v889 = vadd.f32 %v473, %v604
        %v890 = vadd.f32 %v474, %v608
        %v891 = vadd.f32 %v475, %v612
        %v892 = vadd.f32 %v476, %v616
        %v893 = vadd.f32 %v477, %v596
        %v894 = vadd.f32 %v478, %v600
        %v895 = vadd.f32 %v479, %v604
        %v896 = vadd.f32 %v480, %v608
        %v897 = vadd.f32 %v481, %v612
        %v898 = vadd.f32 %v482, %v616
        %v899 = vadd.f32 %v483, %v596
        %v900 = vadd.f32 %v484, %v600
        %v901 = vadd.f32 %v485, %v604
        %v902 = vadd.f32 %v486, %v608
        %v903 = vadd.f32 %v487, %v612
        %v904 = vadd.f32 %v488, %v616
        %v905 = vadd.f32 %v489, %v596
        %v906 = vadd.f32 %v490, %v600
        %v907 = vadd.f32 %v491, %v604
        %v908 = vadd.f32 %v492, %v608
        %v909 = vadd.f32 %v493, %v612
        %v910 = vadd.f32 %v494, %v616
        %v911 = vadd.f32 %v495, %v596
        %v912 = vadd.f32 %v496, %v600
        %v913 = vadd.f32 %v497, %v604
        %v914 = vadd.f32 %v498, %v608
        %v915 = vadd.f32 %v499, %v612
        %v916 = vadd.f32 %v500, %v616
        %v917 = vadd.f32 %v501, %v596
        %v918 = vadd.f32 %v502, %v600
        %v919 = vadd.f32 %v503, %v604
        %v920 = vadd.f32 %v504, %v608
        %v921 = vadd.f32 %v505, %v612
        %v922 = vadd.f32 %v506, %v616
        %v923 = vadd.f32 %v507, %v596
        %v924 = vadd.f32 %v508, %v600
        %v925 = vadd.f32 %v509, %v604
        %v926 = vadd.f32 %v510, %v608
        %v927 = vadd.f32 %v511, %v612
        %v928 = vadd.f32 %v512, %v616
        %v929 = vadd.f32 %v513, %v596
        %v930 = vadd.f32 %v514, %v600
        %v931 = vadd.f32 %v515, %v604
        %v932 = vadd.f32 %v516, %v608
        %v933 = vadd.f32 %v517, %v612
        %v934 = vadd.f32 %v518, %v616
        %v935 = vadd.f32 %v519, %v596
        %v936 = vadd.f32 %v520, %v600
        %v937 = vadd.f32 %v521, %v604
        %v938 = vadd.f32 %v522, %v608
        %v939 = vadd.f32 %v523, %v612
        %v940 = vadd.f32 %v524, %v616
        %v941 = vadd.f32 %v525, %v596
        %v942 = vadd.f32 %v526, %v600
        %v943 = vadd.f32 %v527, %v604
        %v944 = vadd.f32 %v528, %v608
        %v945 = vadd.f32 %v529, %v612
        %v946 = vadd.f32 %v530, %v616
        %v947 = vadd.f32 %v531, %v596
        %v948 = vadd.f32 %v532, %v600
        %v949 = vadd.f32 %v533, %v604
        %v950 = vadd.f32 %v534, %v608
        %v951 = vadd.f32 %v535, %v612
        %v952 = vadd.f32 %v536, %v616
        %v953 = vadd.f32 %v537, %v596
        %v954 = vadd.f32 %v538, %v600
        %v955 = vadd.f32 %v539, %v604
        %v956 = vadd.f32 %v540, %v608
        %v957 = vadd.f32 %v541, %v612
        %v958 = vadd.f32 %v542, %v616
        %v959 = vadd.f32 %v543, %v596
        %v960 = vadd.f32 %v544, %v600
        %v961 = vadd.f32 %v545, %v604
        %v962 = vadd.f32 %v546, %v608
        %v963 = vadd.f32 %v547, %v612
        %v964 = vadd.f32 %v548, %v616
        %v965 = vadd.f32 %v549, %v596
        %v966 = vadd.f32 %v550, %v600
        %v967 = vadd.f32 %v551, %v604
        %v968 = vadd.f32 %v552, %v608
        %v969 = vadd.f32 %v553, %v612
        %v970 = vadd.f32 %v554, %v616
        %v971 = vadd.f32 %v555, %v596
        %v972 = vadd.f32 %v556, %v600
        %v973 = vadd.f32 %v557, %v604
        %v974 = vadd.f32 %v558, %v608
        %v975 = vadd.f32 %v559, %v612
        %v976 = vadd.f32 %v560, %v616
        %v977 = vadd.f32 %v561, %v596
        %v978 = vadd.f32 %v562, %v600
        %v979 = vadd.f32 %v563, %v604
        %v980 = vadd.f32 %v564, %v608
        %v981 = vadd.f32 %v565, %v612
        %v982 = vadd.f32 %v566, %v616
        %v983 = vadd.f32 %v567, %v596
        %v984 = vadd.f32 %v568, %v600
        %v985 = vadd.f32 %v569, %v604
        %v986 = vadd.f32 %v570, %v608
        %v987 = vadd.f32 %v571, %v612
        %v988 = vadd.f32 %v572, %v616
        %v989 = vadd.f32 %v573, %v596
        %v990 = vadd.f32 %v574, %v600
        %v991 = vadd.f32 %v575, %v604
        %v992 = vadd.f32 %v576, %v608
        %v993 = vadd.f32 %v577, %v612
        %v994 = vadd.f32 %v578, %v616
        %v995 = vadd.f32 %v579, %v596
        %v996 = vadd.f32 %v580, %v600
        %v997 = vadd.f32 %v581, %v604
        %v998 = vadd.f32 %v582, %v608
        %v999 = vadd.f32 %v583, %v612
        %v1000 = vadd.f32 %v584, %v616
        %v1001 = vadd.f32 %v585, %v596
        %v1002 = vadd.f32 %v586, %v600
        %v1003 = vadd.f32 %v587, %v604
        %v1004 = vadd.f32 %v588, %v608
        %v1005 = vadd.f32 %v589, %v612
        %v1006 = vadd.f32 %v590, %v616
        %1007 = vst [vmem:[%s201] sm:$0xff] %v623
        %1008 = vst [vmem:[%s201 + $0x8] sm:$0xff] %v624
        %1009 = vst [vmem:[%s201 + $0x10] sm:$0xff] %v625
        %1010 = vst [vmem:[%s201 + $0x18] sm:$0xff] %v626
        %1011 = vst [vmem:[%s201 + $0x20] sm:$0xff] %v627
        %1012 = vst [vmem:[%s201 + $0x28] sm:$0xff] %v628
        %1013 = vst [vmem:[%s201 + $0x30] sm:$0xff] %v629
        %1014 = vst [vmem:[%s201 + $0x38] sm:$0xff] %v630
        %1015 = vst [vmem:[%s201 + $0x40] sm:$0xff] %v631
        %1016 = vst [vmem:[%s201 + $0x48] sm:$0xff] %v632
        %1017 = vst [vmem:[%s201 + $0x50] sm:$0xff] %v633
        %1018 = vst [vmem:[%s201 + $0x58] sm:$0xff] %v634
        %1019 = vst [vmem:[%s201 + $0x60] sm:$0xff] %v635
        %1020 = vst [vmem:[%s201 + $0x68] sm:$0xff] %v636
        %1021 = vst [vmem:[%s201 + $0x70] sm:$0xff] %v637
        %1022 = vst [vmem:[%s201 + $0x78] sm:$0xff] %v638
        %1023 = vst [vmem:[%s201 + $0x80] sm:$0xff] %v639
        %1024 = vst [vmem:[%s201 + $0x88] sm:$0xff] %v640
        %1025 = vst [vmem:[%s201 + $0x90] sm:$0xff] %v641
        %1026 = vst [vmem:[%s201 + $0x98] sm:$0xff] %v642
        %1027 = vst [vmem:[%s201 + $0xa0] sm:$0xff] %v643
        %1028 = vst [vmem:[%s201 + $0xa8] sm:$0xff] %v644
        %1029 = vst [vmem:[%s201 + $0xb0] sm:$0xff] %v645
        %1030 = vst [vmem:[%s201 + $0xb8] sm:$0xff] %v646
        %1031 = vst [vmem:[%s201 + $0xc0] sm:$0xff] %v647
        %1032 = vst [vmem:[%s201 + $0xc8] sm:$0xff] %v648
        %1033 = vst [vmem:[%s201 + $0xd0] sm:$0xff] %v649
        %1034 = vst [vmem:[%s201 + $0xd8] sm:$0xff] %v650
        %1035 = vst [vmem:[%s201 + $0xe0] sm:$0xff] %v651
        %1036 = vst [vmem:[%s201 + $0xe8] sm:$0xff] %v652
        %1037 = vst [vmem:[%s201 + $0xf0] sm:$0xff] %v653
        %1038 = vst [vmem:[%s201 + $0xf8] sm:$0xff] %v654
        %1039 = vst [vmem:[%s201 + $0x100] sm:$0xff] %v655
        %1040 = vst [vmem:[%s201 + $0x108] sm:$0xff] %v656
        %1041 = vst [vmem:[%s201 + $0x110] sm:$0xff] %v657
        %1042 = vst [vmem:[%s201 + $0x118] sm:$0xff] %v658
        %1043 = vst [vmem:[%s201 + $0x120] sm:$0xff] %v659
        %1044 = vst [vmem:[%s201 + $0x128] sm:$0xff] %v660
        %1045 = vst [vmem:[%s201 + $0x130] sm:$0xff] %v661
        %1046 = vst [vmem:[%s201 + $0x138] sm:$0xff] %v662
        %1047 = vst [vmem:[%s201 + $0x140] sm:$0xff] %v663
        %1048 = vst [vmem:[%s201 + $0x148] sm:$0xff] %v664
        %1049 = vst [vmem:[%s201 + $0x150] sm:$0xff] %v665
        %1050 = vst [vmem:[%s201 + $0x158] sm:$0xff] %v666
        %1051 = vst [vmem:[%s201 + $0x160] sm:$0xff] %v667
        %1052 = vst [vmem:[%s201 + $0x168] sm:$0xff] %v668
        %1053 = vst [vmem:[%s201 + $0x170] sm:$0xff] %v669
        %1054 = vst [vmem:[%s201 + $0x178] sm:$0xff] %v670
        %1055 = vst [vmem:[%s201 + $0x180] sm:$0xff] %v671
        %1056 = vst [vmem:[%s201 + $0x188] sm:$0xff] %v672
        %1057 = vst [vmem:[%s201 + $0x190] sm:$0xff] %v673
        %1058 = vst [vmem:[%s201 + $0x198] sm:$0xff] %v674
        %1059 = vst [vmem:[%s201 + $0x1a0] sm:$0xff] %v675
        %1060 = vst [vmem:[%s201 + $0x1a8] sm:$0xff] %v676
        %1061 = vst [vmem:[%s201 + $0x1b0] sm:$0xff] %v677
        %1062 = vst [vmem:[%s201 + $0x1b8] sm:$0xff] %v678
        %1063 = vst [vmem:[%s201 + $0x1c0] sm:$0xff] %v679
        %1064 = vst [vmem:[%s201 + $0x1c8] sm:$0xff] %v680
        %1065 = vst [vmem:[%s201 + $0x1d0] sm:$0xff] %v681
        %1066 = vst [vmem:[%s201 + $0x1d8] sm:$0xff] %v682
        %1067 = vst [vmem:[%s201 + $0x1e0] sm:$0xff] %v683
        %1068 = vst [vmem:[%s201 + $0x1e8] sm:$0xff] %v684
        %1069 = vst [vmem:[%s201 + $0x1f0] sm:$0xff] %v685
        %1070 = vst [vmem:[%s201 + $0x1f8] sm:$0xff] %v686
        %1071 = vst [vmem:[%s201 + $0x200] sm:$0xff] %v687
        %1072 = vst [vmem:[%s201 + $0x208] sm:$0xff] %v688
        %1073 = vst [vmem:[%s201 + $0x210] sm:$0xff] %v689
        %1074 = vst [vmem:[%s201 + $0x218] sm:$0xff] %v690
        %1075 = vst [vmem:[%s201 + $0x220] sm:$0xff] %v691
        %1076 = vst [vmem:[%s201 + $0x228] sm:$0xff] %v692
        %1077 = vst [vmem:[%s201 + $0x230] sm:$0xff] %v693
        %1078 = vst [vmem:[%s201 + $0x238] sm:$0xff] %v694
        %1079 = vst [vmem:[%s201 + $0x240] sm:$0xff] %v695
        %1080 = vst [vmem:[%s201 + $0x248] sm:$0xff] %v696
        %1081 = vst [vmem:[%s201 + $0x250] sm:$0xff] %v697
        %1082 = vst [vmem:[%s201 + $0x258] sm:$0xff] %v698
        %1083 = vst [vmem:[%s201 + $0x260] sm:$0xff] %v699
        %1084 = vst [vmem:[%s201 + $0x268] sm:$0xff] %v700
        %1085 = vst [vmem:[%s201 + $0x270] sm:$0xff] %v701
        %1086 = vst [vmem:[%s201 + $0x278] sm:$0xff] %v702
        %1087 = vst [vmem:[%s201 + $0x280] sm:$0xff] %v703
        %1088 = vst [vmem:[%s201 + $0x288] sm:$0xff] %v704
        %1089 = vst [vmem:[%s201 + $0x290] sm:$0xff] %v705
        %1090 = vst [vmem:[%s201 + $0x298] sm:$0xff] %v706
        %1091 = vst [vmem:[%s201 + $0x2a0] sm:$0xff] %v707
        %1092 = vst [vmem:[%s201 + $0x2a8] sm:$0xff] %v708
        %1093 = vst [vmem:[%s201 + $0x2b0] sm:$0xff] %v709
        %1094 = vst [vmem:[%s201 + $0x2b8] sm:$0xff] %v710
        %1095 = vst [vmem:[%s201 + $0x2c0] sm:$0xff] %v711
        %1096 = vst [vmem:[%s201 + $0x2c8] sm:$0xff] %v712
        %1097 = vst [vmem:[%s201 + $0x2d0] sm:$0xff] %v713
        %1098 = vst [vmem:[%s201 + $0x2d8] sm:$0xff] %v714
        %1099 = vst [vmem:[%s201 + $0x2e0] sm:$0xff] %v715
        %1100 = vst [vmem:[%s201 + $0x2e8] sm:$0xff] %v716
        %1101 = vst [vmem:[%s201 + $0x2f0] sm:$0xff] %v717
        %1102 = vst [vmem:[%s201 + $0x2f8] sm:$0xff] %v718
        %1103 = vst [vmem:[%s201 + $0x300] sm:$0xff] %v719
        %1104 = vst [vmem:[%s201 + $0x308] sm:$0xff] %v720
        %1105 = vst [vmem:[%s201 + $0x310] sm:$0xff] %v721
        %1106 = vst [vmem:[%s201 + $0x318] sm:$0xff] %v722
        %1107 = vst [vmem:[%s201 + $0x320] sm:$0xff] %v723
        %1108 = vst [vmem:[%s201 + $0x328] sm:$0xff] %v724
        %1109 = vst [vmem:[%s201 + $0x330] sm:$0xff] %v725
        %1110 = vst [vmem:[%s201 + $0x338] sm:$0xff] %v726
        %1111 = vst [vmem:[%s201 + $0x340] sm:$0xff] %v727
        %1112 = vst [vmem:[%s201 + $0x348] sm:$0xff] %v728
        %1113 = vst [vmem:[%s201 + $0x350] sm:$0xff] %v729
        %1114 = vst [vmem:[%s201 + $0x358] sm:$0xff] %v730
        %1115 = vst [vmem:[%s201 + $0x360] sm:$0xff] %v731
        %1116 = vst [vmem:[%s201 + $0x368] sm:$0xff] %v732
        %1117 = vst [vmem:[%s201 + $0x370] sm:$0xff] %v733
        %1118 = vst [vmem:[%s201 + $0x378] sm:$0xff] %v734
        %1119 = vst [vmem:[%s201 + $0x380] sm:$0xff] %v735
        %1120 = vst [vmem:[%s201 + $0x388] sm:$0xff] %v736
        %1121 = vst [vmem:[%s201 + $0x390] sm:$0xff] %v737
        %1122 = vst [vmem:[%s201 + $0x398] sm:$0xff] %v738
        %1123 = vst [vmem:[%s201 + $0x3a0] sm:$0xff] %v739
        %1124 = vst [vmem:[%s201 + $0x3a8] sm:$0xff] %v740
        %1125 = vst [vmem:[%s201 + $0x3b0] sm:$0xff] %v741
        %1126 = vst [vmem:[%s201 + $0x3b8] sm:$0xff] %v742
        %1127 = vst [vmem:[%s201 + $0x3c0] sm:$0xff] %v743
        %1128 = vst [vmem:[%s201 + $0x3c8] sm:$0xff] %v744
        %1129 = vst [vmem:[%s201 + $0x3d0] sm:$0xff] %v745
        %1130 = vst [vmem:[%s201 + $0x3d8] sm:$0xff] %v746
        %1131 = vst [vmem:[%s201 + $0x3e0] sm:$0xff] %v747
        %1132 = vst [vmem:[%s201 + $0x3e8] sm:$0xff] %v748
        %1133 = vst [vmem:[%s201 + $0x3f0] sm:$0xff] %v749
        %1134 = vst [vmem:[%s201 + $0x3f8] sm:$0xff] %v750
        %1135 = vst [vmem:[%s201 + $0x400] sm:$0xff] %v751
        %1136 = vst [vmem:[%s201 + $0x408] sm:$0xff] %v752
        %1137 = vst [vmem:[%s201 + $0x410] sm:$0xff] %v753
        %1138 = vst [vmem:[%s201 + $0x418] sm:$0xff] %v754
        %1139 = vst [vmem:[%s201 + $0x420] sm:$0xff] %v755
        %1140 = vst [vmem:[%s201 + $0x428] sm:$0xff] %v756
        %1141 = vst [vmem:[%s201 + $0x430] sm:$0xff] %v757
        %1142 = vst [vmem:[%s201 + $0x438] sm:$0xff] %v758
        %1143 = vst [vmem:[%s201 + $0x440] sm:$0xff] %v759
        %1144 = vst [vmem:[%s201 + $0x448] sm:$0xff] %v760
        %1145 = vst [vmem:[%s201 + $0x450] sm:$0xff] %v761
        %1146 = vst [vmem:[%s201 + $0x458] sm:$0xff] %v762
        %1147 = vst [vmem:[%s201 + $0x460] sm:$0xff] %v763
        %1148 = vst [vmem:[%s201 + $0x468] sm:$0xff] %v764
        %1149 = vst [vmem:[%s201 + $0x470] sm:$0xff] %v765
        %1150 = vst [vmem:[%s201 + $0x478] sm:$0xff] %v766
        %1151 = vst [vmem:[%s201 + $0x480] sm:$0xff] %v767
        %1152 = vst [vmem:[%s201 + $0x488] sm:$0xff] %v768
        %1153 = vst [vmem:[%s201 + $0x490] sm:$0xff] %v769
        %1154 = vst [vmem:[%s201 + $0x498] sm:$0xff] %v770
        %1155 = vst [vmem:[%s201 + $0x4a0] sm:$0xff] %v771
        %1156 = vst [vmem:[%s201 + $0x4a8] sm:$0xff] %v772
        %1157 = vst [vmem:[%s201 + $0x4b0] sm:$0xff] %v773
        %1158 = vst [vmem:[%s201 + $0x4b8] sm:$0xff] %v774
        %1159 = vst [vmem:[%s201 + $0x4c0] sm:$0xff] %v775
        %1160 = vst [vmem:[%s201 + $0x4c8] sm:$0xff] %v776
        %1161 = vst [vmem:[%s201 + $0x4d0] sm:$0xff] %v777
        %1162 = vst [vmem:[%s201 + $0x4d8] sm:$0xff] %v778
        %1163 = vst [vmem:[%s201 + $0x4e0] sm:$0xff] %v779
        %1164 = vst [vmem:[%s201 + $0x4e8] sm:$0xff] %v780
        %1165 = vst [vmem:[%s201 + $0x4f0] sm:$0xff] %v781
        %1166 = vst [vmem:[%s201 + $0x4f8] sm:$0xff] %v782
        %1167 = vst [vmem:[%s201 + $0x500] sm:$0xff] %v783
        %1168 = vst [vmem:[%s201 + $0x508] sm:$0xff] %v784
        %1169 = vst [vmem:[%s201 + $0x510] sm:$0xff] %v785
        %1170 = vst [vmem:[%s201 + $0x518] sm:$0xff] %v786
        %1171 = vst [vmem:[%s201 + $0x520] sm:$0xff] %v787
        %1172 = vst [vmem:[%s201 + $0x528] sm:$0xff] %v788
        %1173 = vst [vmem:[%s201 + $0x530] sm:$0xff] %v789
        %1174 = vst [vmem:[%s201 + $0x538] sm:$0xff] %v790
        %1175 = vst [vmem:[%s201 + $0x540] sm:$0xff] %v791
        %1176 = vst [vmem:[%s201 + $0x548] sm:$0xff] %v792
        %1177 = vst [vmem:[%s201 + $0x550] sm:$0xff] %v793
        %1178 = vst [vmem:[%s201 + $0x558] sm:$0xff] %v794
        %1179 = vst [vmem:[%s201 + $0x560] sm:$0xff] %v795
        %1180 = vst [vmem:[%s201 + $0x568] sm:$0xff] %v796
        %1181 = vst [vmem:[%s201 + $0x570] sm:$0xff] %v797
        %1182 = vst [vmem:[%s201 + $0x578] sm:$0xff] %v798
        %1183 = vst [vmem:[%s201 + $0x580] sm:$0xff] %v799
        %1184 = vst [vmem:[%s201 + $0x588] sm:$0xff] %v800
        %1185 = vst [vmem:[%s201 + $0x590] sm:$0xff] %v801
        %1186 = vst [vmem:[%s201 + $0x598] sm:$0xff] %v802
        %1187 = vst [vmem:[%s201 + $0x5a0] sm:$0xff] %v803
        %1188 = vst [vmem:[%s201 + $0x5a8] sm:$0xff] %v804
        %1189 = vst [vmem:[%s201 + $0x5b0] sm:$0xff] %v805
        %1190 = vst [vmem:[%s201 + $0x5b8] sm:$0xff] %v806
        %1191 = vst [vmem:[%s201 + $0x5c0] sm:$0xff] %v807
        %1192 = vst [vmem:[%s201 + $0x5c8] sm:$0xff] %v808
        %1193 = vst [vmem:[%s201 + $0x5d0] sm:$0xff] %v809
        %1194 = vst [vmem:[%s201 + $0x5d8] sm:$0xff] %v810
        %1195 = vst [vmem:[%s201 + $0x5e0] sm:$0xff] %v811
        %1196 = vst [vmem:[%s201 + $0x5e8] sm:$0xff] %v812
        %1197 = vst [vmem:[%s201 + $0x5f0] sm:$0xff] %v813
        %1198 = vst [vmem:[%s201 + $0x5f8] sm:$0xff] %v814
        %1199 = vst [vmem:[%s201 + $0x600] sm:$0xff] %v815
        %1200 = vst [vmem:[%s201 + $0x608] sm:$0xff] %v816
        %1201 = vst [vmem:[%s201 + $0x610] sm:$0xff] %v817
        %1202 = vst [vmem:[%s201 + $0x618] sm:$0xff] %v818
        %1203 = vst [vmem:[%s201 + $0x620] sm:$0xff] %v819
        %1204 = vst [vmem:[%s201 + $0x628] sm:$0xff] %v820
        %1205 = vst [vmem:[%s201 + $0x630] sm:$0xff] %v821
        %1206 = vst [vmem:[%s201 + $0x638] sm:$0xff] %v822
        %1207 = vst [vmem:[%s201 + $0x640] sm:$0xff] %v823
        %1208 = vst [vmem:[%s201 + $0x648] sm:$0xff] %v824
        %1209 = vst [vmem:[%s201 + $0x650] sm:$0xff] %v825
        %1210 = vst [vmem:[%s201 + $0x658] sm:$0xff] %v826
        %1211 = vst [vmem:[%s201 + $0x660] sm:$0xff] %v827
        %1212 = vst [vmem:[%s201 + $0x668] sm:$0xff] %v828
        %1213 = vst [vmem:[%s201 + $0x670] sm:$0xff] %v829
        %1214 = vst [vmem:[%s201 + $0x678] sm:$0xff] %v830
        %1215 = vst [vmem:[%s201 + $0x680] sm:$0xff] %v831
        %1216 = vst [vmem:[%s201 + $0x688] sm:$0xff] %v832
        %1217 = vst [vmem:[%s201 + $0x690] sm:$0xff] %v833
        %1218 = vst [vmem:[%s201 + $0x698] sm:$0xff] %v834
        %1219 = vst [vmem:[%s201 + $0x6a0] sm:$0xff] %v835
        %1220 = vst [vmem:[%s201 + $0x6a8] sm:$0xff] %v836
        %1221 = vst [vmem:[%s201 + $0x6b0] sm:$0xff] %v837
        %1222 = vst [vmem:[%s201 + $0x6b8] sm:$0xff] %v838
        %1223 = vst [vmem:[%s201 + $0x6c0] sm:$0xff] %v839
        %1224 = vst [vmem:[%s201 + $0x6c8] sm:$0xff] %v840
        %1225 = vst [vmem:[%s201 + $0x6d0] sm:$0xff] %v841
        %1226 = vst [vmem:[%s201 + $0x6d8] sm:$0xff] %v842
        %1227 = vst [vmem:[%s201 + $0x6e0] sm:$0xff] %v843
        %1228 = vst [vmem:[%s201 + $0x6e8] sm:$0xff] %v844
        %1229 = vst [vmem:[%s201 + $0x6f0] sm:$0xff] %v845
        %1230 = vst [vmem:[%s201 + $0x6f8] sm:$0xff] %v846
        %1231 = vst [vmem:[%s201 + $0x700] sm:$0xff] %v847
        %1232 = vst [vmem:[%s201 + $0x708] sm:$0xff] %v848
        %1233 = vst [vmem:[%s201 + $0x710] sm:$0xff] %v849
        %1234 = vst [vmem:[%s201 + $0x718] sm:$0xff] %v850
        %1235 = vst [vmem:[%s201 + $0x720] sm:$0xff] %v851
        %1236 = vst [vmem:[%s201 + $0x728] sm:$0xff] %v852
        %1237 = vst [vmem:[%s201 + $0x730] sm:$0xff] %v853
        %1238 = vst [vmem:[%s201 + $0x738] sm:$0xff] %v854
        %1239 = vst [vmem:[%s201 + $0x740] sm:$0xff] %v855
        %1240 = vst [vmem:[%s201 + $0x748] sm:$0xff] %v856
        %1241 = vst [vmem:[%s201 + $0x750] sm:$0xff] %v857
        %1242 = vst [vmem:[%s201 + $0x758] sm:$0xff] %v858
        %1243 = vst [vmem:[%s201 + $0x760] sm:$0xff] %v859
        %1244 = vst [vmem:[%s201 + $0x768] sm:$0xff] %v860
        %1245 = vst [vmem:[%s201 + $0x770] sm:$0xff] %v861
        %1246 = vst [vmem:[%s201 + $0x778] sm:$0xff] %v862
        %1247 = vst [vmem:[%s201 + $0x780] sm:$0xff] %v863
        %1248 = vst [vmem:[%s201 + $0x788] sm:$0xff] %v864
        %1249 = vst [vmem:[%s201 + $0x790] sm:$0xff] %v865
        %1250 = vst [vmem:[%s201 + $0x798] sm:$0xff] %v866
        %1251 = vst [vmem:[%s201 + $0x7a0] sm:$0xff] %v867
        %1252 = vst [vmem:[%s201 + $0x7a8] sm:$0xff] %v868
        %1253 = vst [vmem:[%s201 + $0x7b0] sm:$0xff] %v869
        %1254 = vst [vmem:[%s201 + $0x7b8] sm:$0xff] %v870
        %1255 = vst [vmem:[%s201 + $0x7c0] sm:$0xff] %v871
        %1256 = vst [vmem:[%s201 + $0x7c8] sm:$0xff] %v872
        %1257 = vst [vmem:[%s201 + $0x7d0] sm:$0xff] %v873
        %1258 = vst [vmem:[%s201 + $0x7d8] sm:$0xff] %v874
        %1259 = vst [vmem:[%s201 + $0x7e0] sm:$0xff] %v875
        %1260 = vst [vmem:[%s201 + $0x7e8] sm:$0xff] %v876
        %1261 = vst [vmem:[%s201 + $0x7f0] sm:$0xff] %v877
        %1262 = vst [vmem:[%s201 + $0x7f8] sm:$0xff] %v878
        %1263 = vst [vmem:[%s201 + $0x800] sm:$0xff] %v879
        %1264 = vst [vmem:[%s201 + $0x808] sm:$0xff] %v880
        %1265 = vst [vmem:[%s201 + $0x810] sm:$0xff] %v881
        %1266 = vst [vmem:[%s201 + $0x818] sm:$0xff] %v882
        %1267 = vst [vmem:[%s201 + $0x820] sm:$0xff] %v883
        %1268 = vst [vmem:[%s201 + $0x828] sm:$0xff] %v884
        %1269 = vst [vmem:[%s201 + $0x830] sm:$0xff] %v885
        %1270 = vst [vmem:[%s201 + $0x838] sm:$0xff] %v886
        %1271 = vst [vmem:[%s201 + $0x840] sm:$0xff] %v887
        %1272 = vst [vmem:[%s201 + $0x848] sm:$0xff] %v888
        %1273 = vst [vmem:[%s201 + $0x850] sm:$0xff] %v889
        %1274 = vst [vmem:[%s201 + $0x858] sm:$0xff] %v890
        %1275 = vst [vmem:[%s201 + $0x860] sm:$0xff] %v891
        %1276 = vst [vmem:[%s201 + $0x868] sm:$0xff] %v892
        %1277 = vst [vmem:[%s201 + $0x870] sm:$0xff] %v893
        %1278 = vst [vmem:[%s201 + $0x878] sm:$0xff] %v894
        %1279 = vst [vmem:[%s201 + $0x880] sm:$0xff] %v895
        %1280 = vst [vmem:[%s201 + $0x888] sm:$0xff] %v896
        %1281 = vst [vmem:[%s201 + $0x890] sm:$0xff] %v897
        %1282 = vst [vmem:[%s201 + $0x898] sm:$0xff] %v898
        %1283 = vst [vmem:[%s201 + $0x8a0] sm:$0xff] %v899
        %1284 = vst [vmem:[%s201 + $0x8a8] sm:$0xff] %v900
        %1285 = vst [vmem:[%s201 + $0x8b0] sm:$0xff] %v901
        %1286 = vst [vmem:[%s201 + $0x8b8] sm:$0xff] %v902
        %1287 = vst [vmem:[%s201 + $0x8c0] sm:$0xff] %v903
        %1288 = vst [vmem:[%s201 + $0x8c8] sm:$0xff] %v904
        %1289 = vst [vmem:[%s201 + $0x8d0] sm:$0xff] %v905
        %1290 = vst [vmem:[%s201 + $0x8d8] sm:$0xff] %v906
        %1291 = vst [vmem:[%s201 + $0x8e0] sm:$0xff] %v907
        %1292 = vst [vmem:[%s201 + $0x8e8] sm:$0xff] %v908
        %1293 = vst [vmem:[%s201 + $0x8f0] sm:$0xff] %v909
        %1294 = vst [vmem:[%s201 + $0x8f8] sm:$0xff] %v910
        %1295 = vst [vmem:[%s201 + $0x900] sm:$0xff] %v911
        %1296 = vst [vmem:[%s201 + $0x908] sm:$0xff] %v912
        %1297 = vst [vmem:[%s201 + $0x910] sm:$0xff] %v913
        %1298 = vst [vmem:[%s201 + $0x918] sm:$0xff] %v914
        %1299 = vst [vmem:[%s201 + $0x920] sm:$0xff] %v915
        %1300 = vst [vmem:[%s201 + $0x928] sm:$0xff] %v916
        %1301 = vst [vmem:[%s201 + $0x930] sm:$0xff] %v917
        %1302 = vst [vmem:[%s201 + $0x938] sm:$0xff] %v918
        %1303 = vst [vmem:[%s201 + $0x940] sm:$0xff] %v919
        %1304 = vst [vmem:[%s201 + $0x948] sm:$0xff] %v920
        %1305 = vst [vmem:[%s201 + $0x950] sm:$0xff] %v921
        %1306 = vst [vmem:[%s201 + $0x958] sm:$0xff] %v922
        %1307 = vst [vmem:[%s201 + $0x960] sm:$0xff] %v923
        %1308 = vst [vmem:[%s201 + $0x968] sm:$0xff] %v924
        %1309 = vst [vmem:[%s201 + $0x970] sm:$0xff] %v925
        %1310 = vst [vmem:[%s201 + $0x978] sm:$0xff] %v926
        %1311 = vst [vmem:[%s201 + $0x980] sm:$0xff] %v927
        %1312 = vst [vmem:[%s201 + $0x988] sm:$0xff] %v928
        %1313 = vst [vmem:[%s201 + $0x990] sm:$0xff] %v929
        %1314 = vst [vmem:[%s201 + $0x998] sm:$0xff] %v930
        %1315 = vst [vmem:[%s201 + $0x9a0] sm:$0xff] %v931
        %1316 = vst [vmem:[%s201 + $0x9a8] sm:$0xff] %v932
        %1317 = vst [vmem:[%s201 + $0x9b0] sm:$0xff] %v933
        %1318 = vst [vmem:[%s201 + $0x9b8] sm:$0xff] %v934
        %1319 = vst [vmem:[%s201 + $0x9c0] sm:$0xff] %v935
        %1320 = vst [vmem:[%s201 + $0x9c8] sm:$0xff] %v936
        %1321 = vst [vmem:[%s201 + $0x9d0] sm:$0xff] %v937
        %1322 = vst [vmem:[%s201 + $0x9d8] sm:$0xff] %v938
        %1323 = vst [vmem:[%s201 + $0x9e0] sm:$0xff] %v939
        %1324 = vst [vmem:[%s201 + $0x9e8] sm:$0xff] %v940
        %1325 = vst [vmem:[%s201 + $0x9f0] sm:$0xff] %v941
        %1326 = vst [vmem:[%s201 + $0x9f8] sm:$0xff] %v942
        %1327 = vst [vmem:[%s201 + $0xa00] sm:$0xff] %v943
        %1328 = vst [vmem:[%s201 + $0xa08] sm:$0xff] %v944
        %1329 = vst [vmem:[%s201 + $0xa10] sm:$0xff] %v945
        %1330 = vst [vmem:[%s201 + $0xa18] sm:$0xff] %v946
        %1331 = vst [vmem:[%s201 + $0xa20] sm:$0xff] %v947
        %1332 = vst [vmem:[%s201 + $0xa28] sm:$0xff] %v948
        %1333 = vst [vmem:[%s201 + $0xa30] sm:$0xff] %v949
        %1334 = vst [vmem:[%s201 + $0xa38] sm:$0xff] %v950
        %1335 = vst [vmem:[%s201 + $0xa40] sm:$0xff] %v951
        %1336 = vst [vmem:[%s201 + $0xa48] sm:$0xff] %v952
        %1337 = vst [vmem:[%s201 + $0xa50] sm:$0xff] %v953
        %1338 = vst [vmem:[%s201 + $0xa58] sm:$0xff] %v954
        %1339 = vst [vmem:[%s201 + $0xa60] sm:$0xff] %v955
        %1340 = vst [vmem:[%s201 + $0xa68] sm:$0xff] %v956
        %1341 = vst [vmem:[%s201 + $0xa70] sm:$0xff] %v957
        %1342 = vst [vmem:[%s201 + $0xa78] sm:$0xff] %v958
        %1343 = vst [vmem:[%s201 + $0xa80] sm:$0xff] %v959
        %1344 = vst [vmem:[%s201 + $0xa88] sm:$0xff] %v960
        %1345 = vst [vmem:[%s201 + $0xa90] sm:$0xff] %v961
        %1346 = vst [vmem:[%s201 + $0xa98] sm:$0xff] %v962
        %1347 = vst [vmem:[%s201 + $0xaa0] sm:$0xff] %v963
        %1348 = vst [vmem:[%s201 + $0xaa8] sm:$0xff] %v964
        %1349 = vst [vmem:[%s201 + $0xab0] sm:$0xff] %v965
        %1350 = vst [vmem:[%s201 + $0xab8] sm:$0xff] %v966
        %1351 = vst [vmem:[%s201 + $0xac0] sm:$0xff] %v967
        %1352 = vst [vmem:[%s201 + $0xac8] sm:$0xff] %v968
        %1353 = vst [vmem:[%s201 + $0xad0] sm:$0xff] %v969
        %1354 = vst [vmem:[%s201 + $0xad8] sm:$0xff] %v970
        %1355 = vst [vmem:[%s201 + $0xae0] sm:$0xff] %v971
        %1356 = vst [vmem:[%s201 + $0xae8] sm:$0xff] %v972
        %1357 = vst [vmem:[%s201 + $0xaf0] sm:$0xff] %v973
        %1358 = vst [vmem:[%s201 + $0xaf8] sm:$0xff] %v974
        %1359 = vst [vmem:[%s201 + $0xb00] sm:$0xff] %v975
        %1360 = vst [vmem:[%s201 + $0xb08] sm:$0xff] %v976
        %1361 = vst [vmem:[%s201 + $0xb10] sm:$0xff] %v977
        %1362 = vst [vmem:[%s201 + $0xb18] sm:$0xff] %v978
        %1363 = vst [vmem:[%s201 + $0xb20] sm:$0xff] %v979
        %1364 = vst [vmem:[%s201 + $0xb28] sm:$0xff] %v980
        %1365 = vst [vmem:[%s201 + $0xb30] sm:$0xff] %v981
        %1366 = vst [vmem:[%s201 + $0xb38] sm:$0xff] %v982
        %1367 = vst [vmem:[%s201 + $0xb40] sm:$0xff] %v983
        %1368 = vst [vmem:[%s201 + $0xb48] sm:$0xff] %v984
        %1369 = vst [vmem:[%s201 + $0xb50] sm:$0xff] %v985
        %1370 = vst [vmem:[%s201 + $0xb58] sm:$0xff] %v986
        %1371 = vst [vmem:[%s201 + $0xb60] sm:$0xff] %v987
        %1372 = vst [vmem:[%s201 + $0xb68] sm:$0xff] %v988
        %1373 = vst [vmem:[%s201 + $0xb70] sm:$0xff] %v989
        %1374 = vst [vmem:[%s201 + $0xb78] sm:$0xff] %v990
        %1375 = vst [vmem:[%s201 + $0xb80] sm:$0xff] %v991
        %1376 = vst [vmem:[%s201 + $0xb88] sm:$0xff] %v992
        %1377 = vst [vmem:[%s201 + $0xb90] sm:$0xff] %v993
        %1378 = vst [vmem:[%s201 + $0xb98] sm:$0xff] %v994
        %1379 = vst [vmem:[%s201 + $0xba0] sm:$0xff] %v995
        %1380 = vst [vmem:[%s201 + $0xba8] sm:$0xff] %v996
        %1381 = vst [vmem:[%s201 + $0xbb0] sm:$0xff] %v997
        %1382 = vst [vmem:[%s201 + $0xbb8] sm:$0xff] %v998
        %1383 = vst [vmem:[%s201 + $0xbc0] sm:$0xff] %v999
        %1384 = vst [vmem:[%s201 + $0xbc8] sm:$0xff] %v1000
        %1385 = vst [vmem:[%s201 + $0xbd0] sm:$0xff] %v1001
        %1386 = vst [vmem:[%s201 + $0xbd8] sm:$0xff] %v1002
        %1387 = vst [vmem:[%s201 + $0xbe0] sm:$0xff] %v1003
        %1388 = vst [vmem:[%s201 + $0xbe8] sm:$0xff] %v1004
        %1389 = vst [vmem:[%s201 + $0xbf0] sm:$0xff] %v1005
        %1390 = vst [vmem:[%s201 + $0xbf8] sm:$0xff] %v1006
        %s1391 = sand.u32 %s96, 1
        %s1392 = scalar_lea.sflag [#allocation4], %s1391
        %s1393 = sand.u32 %s96, 1
        %s1394 = smul.addr %s1393, 3072
        %s1395 = scalar_lea.vmem [#allocation7], %s1394
        // Predicated region
        $region37: #{tpu_custom_call.1} parent=27 // pred_check
          %p1396 = pneg %p106
        $region38: #{tpu_custom_call.1} parent=27 // pred_check_branch
          %1398 = sbr.rel (%p1396) target = $region40
        $region39: #{tpu_custom_call.1} parent=27 // pred_region
          %s1399 = smul.u32 64, %s24
          %s1400 = smul.u32 6, %s25
          %s1402 = ssub.s32 49152, 49152
          %1403 = vsyncadd %s1392, %s1402
          %s1404 = smul.addr %s1399, 6
          %s1405 = sadd.s32 %s1400, %s1404
          %s1406 = smul.addr %s1405, 128
          %s1407 = scalar_lea.hbm %s2, %s1406
          %s1408 = sshll.u32 %s1395, 4
          %s1409 = int_to_ptr.vmem [resolvable:$true] %s1408
          %1414 = dma.vmem_to_hbm [thread:$0]  %s1409, 49152, %s1407, %s1392, 768, 768, 48
        $region40: #{tpu_custom_call.1} parent=27 // pred_fallthru
          _
      $region28: #{tpu_custom_call.1} parent=5 // pred_fallthru
        _
      %p1415 = scmp.le.s32.totalorder 2, %s15
      // Predicated region
      $region41: #{tpu_custom_call.1} parent=5 // pred_check
        %p1416 = pneg %p1415
      $region42: #{tpu_custom_call.1} parent=5 // pred_check_branch
        %1418 = sbr.rel (%p1416) target = $region44
      $region43: #{tpu_custom_call.1} parent=5 // pred_region
        %s1419 = ssub.s32 %s15, 2
        // Predicated region
        $region45: #{tpu_custom_call.1} parent=43 // pred_check
          %p1420 = pneg %p112
        $region46: #{tpu_custom_call.1} parent=43 // pred_check_branch
          %1422 = sbr.rel (%p1420) target = $region48
        $region47: #{tpu_custom_call.1} parent=43 // pred_region
          %s1423 = sand.u32 %s97, 1
          %s1424 = scalar_lea.sflag [#allocation4], %s1423
          %s1425 = sand.u32 %s97, 1
          %s1426 = smul.addr %s1425, 3072
          %s1427 = scalar_lea.vmem [#allocation7], %s1426
          %1428 = dma.done %s1424, 49152
        $region48: #{tpu_custom_call.1} parent=43 // pred_fallthru
          _
      $region44: #{tpu_custom_call.1} parent=5 // pred_fallthru
        _
    $region6: #{tpu_custom_call.1} parent=1 // loop_footer
      %s19 = sadd.s32 1, %s15
    $region7: #{tpu_custom_call.1} parent=1 // loop_footer_branch
      %14 = sbr.rel target = $region3
    $region8: #{tpu_custom_call.1} parent=1 // loop_exit
      _
    %1429 = vsyncpa [#allocation3], 1
    %s1430 = scalar_lea.sflag [#allocation3], 1
    %1431 = vsyncpa %s1430, 1
    %1432 = vsyncpa [#allocation6], 1
    %1433 = vsyncpa [#allocation4], 1
    %s1434 = scalar_lea.sflag [#allocation4], 1
    %1435 = vsyncpa %s1434, 1

</llo_original>
